<compile_context>
chip_gen: v7x
topology: tpu7x:2x2x1
jax: 0.10.0
libtpu: 0.0.40
codegen_flags: <defaults>
</compile_context>

<pallas_src>
import functools

import jax
import jax.numpy as jnp
from jax import lax
from jax.experimental import pallas as pl
from jax.experimental.pallas import tpu as pltpu


def _round_up(x, m):
    return (x + m - 1) // m * m


def _triplet_wrt_kernel(xq_ref, xk_ref, tcol_ref, trow_ref,      # inputs
                        loss_ref, corr_ref,                      # outputs (1, 1)
                        sqk_row_ref, sclk_row_ref,               # scratch (1, npad)
                        *, n_valid, npad, tm, normalize_feature):
    i = pl.program_id(0)
    nsteps = pl.num_programs(0)
    inv_n = 1.0 / n_valid
    row0 = i * tm

    # ---- one-time init (step 0): key-side squared norms (+ inverse norms) and
    #      zeroed accumulators. Grid axis is "arbitrary" => runs sequentially.
    @pl.when(i == 0)
    def _init():
        xk32 = xk_ref[...].astype(jnp.float32)                   # (npad, D)
        sq = jnp.sum(xk32 * xk32, axis=1, keepdims=True)         # (npad, 1)
        if normalize_feature:
            inv = 1.0 / (jnp.sqrt(sq) + 1e-12)                   # x / (||x|| + 1e-12)
            sqk_row_ref[...] = jnp.transpose(sq * inv * inv)     # ||x_n||^2, (1, npad)
            sclk_row_ref[...] = jnp.transpose(inv)
        else:
            sqk_row_ref[...] = jnp.transpose(sq)
        loss_ref[...] = jnp.zeros_like(loss_ref)
        corr_ref[...] = jnp.zeros_like(corr_ref)

    # ---- query block ----
    xq = xq_ref[...]                                             # (tm, D) native dtype
    xq32 = xq.astype(jnp.float32)
    sq_q = jnp.sum(xq32 * xq32, axis=1, keepdims=True)           # (tm, 1)

    # Gram block on the MXU in native dtype; A @ B^T via contracting dims (1,1)
    # (no explicit transpose of x).
    gram = lax.dot_general(xq, xk_ref[...], (((1,), (1,)), ((), ())),
                           preferred_element_type=jnp.float32)   # (tm, npad)

    if normalize_feature:
        inv_q = 1.0 / (jnp.sqrt(sq_q) + 1e-12)
        sq_q = sq_q * inv_q * inv_q
        gram = gram * inv_q * sclk_row_ref[...]

    # ---- pdist_torch: sqrt(clamp(|a|^2 + |b|^2 - 2 a.b, min=1e-12)) ----
    dist2 = sq_q + sqk_row_ref[...] - 2.0 * gram
    dist = jnp.sqrt(jnp.maximum(dist2, 1e-12))                   # (tm, npad)

    # ---- pos / neg masks (padded columns are neither pos nor neg) ----
    tq = tcol_ref[...]                                           # (tm, 1)  int32
    tk = trow_ref[...]                                           # (1, npad) int32
    col_ids = lax.broadcasted_iota(jnp.int32, (1, npad), 1)
    col_valid = (col_ids < n_valid).astype(jnp.float32)          # (1, npad)
    eq = tq == tk                                                # (tm, npad) bool
    is_pos = jnp.where(eq, col_valid, 0.0)
    is_neg = jnp.where(eq, 0.0, col_valid)

    dist_ap = dist * is_pos
    dist_an = dist * is_neg

    # ---- fused softmax-weighted means (no weight matrices, no N^2 divide) ----
    max_ap = jnp.max(dist_ap, axis=1, keepdims=True)             # already masked
    e_ap = jnp.exp(dist_ap - max_ap) * is_pos
    z_ap = jnp.sum(e_ap, axis=1, keepdims=True) + 1e-6
    num_ap = jnp.sum(dist_ap * e_ap, axis=1, keepdims=True)
    furthest_positive = num_ap * pl.reciprocal(z_ap, approx=True) * inv_n  # torch.mean

    neg_an = -dist_an
    max_an = jnp.max(neg_an, axis=1, keepdims=True)              # already masked
    e_an = jnp.exp(neg_an - max_an) * is_neg
    z_an = jnp.sum(e_an, axis=1, keepdims=True) + 1e-6
    num_an = jnp.sum(dist_an * e_an, axis=1, keepdims=True)
    closest_negative = num_an * pl.reciprocal(z_an, approx=True) * inv_n

    # ---- SoftMarginLoss(cn - fp, y=1): stable softplus(-margin) ----
    margin = closest_negative - furthest_positive                # (tm, 1)
    sp = jnp.maximum(-margin, 0.0) + jnp.log1p(jnp.exp(-jnp.abs(margin)))

    row_ids = lax.broadcasted_iota(jnp.int32, (tm, 1), 0) + row0
    row_valid = (row_ids < n_valid).astype(jnp.float32)          # (tm, 1)

    loss_ref[...] += jnp.sum(sp * row_valid).reshape(1, 1)
    ok = jnp.logical_and(margin >= 0.0, row_ids < n_valid)
    corr_ref[...] += jnp.sum(ok.astype(jnp.int32)).reshape(1, 1)

    # ---- finalize: SoftMarginLoss averages over the N real rows ----
    @pl.when(i == nsteps - 1)
    def _finalize():
        loss_ref[...] = loss_ref[...] * inv_n


def triplet_loss_wrt(inputs, targets, normalize_feature=False, block_rows=128):
    """inputs: (N, D) float embeddings (any float dtype), targets: (N,) int labels.

    Returns (loss, correct) matching TripletLoss_WRT.forward.
    """
    N, D = inputs.shape
    npad = _round_up(max(N, 1), 128)          # lane-dense (N, N) intermediates
    tm = block_rows if (npad % block_rows == 0) else 128
    tm = min(tm, npad)
    grid = (npad // tm,)

    x_pad = inputs
    t = targets.astype(jnp.int32)
    if npad != N:
        x_pad = jnp.pad(inputs, ((0, npad - N), (0, 0)))
        t = jnp.pad(t, (0, npad - N), constant_values=-1)   # value irrelevant (masked)
    t_col = t.reshape(npad, 1)
    t_row = t.reshape(1, npad)

    kernel = functools.partial(
        _triplet_wrt_kernel, n_valid=N, npad=npad, tm=tm,
        normalize_feature=normalize_feature)

    esize = x_pad.dtype.itemsize
    # live-set estimate: resident keys + (double-buffered) query block +
    # ~12 (tm, npad) f32 temporaries; 2x headroom, clamped to a safe range.
    est = (npad * D + 4 * tm * D) * esize + 12 * tm * npad * 4 + (1 << 20)
    vmem_limit = int(min(max(2 * est, 16 * 1024 * 1024), 64 * 1024 * 1024))

    cost = pl.CostEstimate(
        flops=2 * npad * npad * D + 40 * npad * npad,
        transcendentals=3 * npad * npad,
        bytes_accessed=2 * npad * D * esize + 8 * npad + 16,
    )

    loss, correct = pl.pallas_call(
        kernel,
        out_shape=(
            jax.ShapeDtypeStruct((1, 1), jnp.float32),
            jax.ShapeDtypeStruct((1, 1), jnp.int32),
        ),
        grid_spec=pltpu.PrefetchScalarGridSpec(
            num_scalar_prefetch=0,
            grid=grid,
            in_specs=[
                pl.BlockSpec((tm, D), lambda i: (i, 0)),     # query row block (pipelined)
                pl.BlockSpec((npad, D), lambda i: (0, 0)),   # all rows (resident keys)
                pl.BlockSpec((tm, 1), lambda i: (i, 0)),     # targets, column layout
                pl.BlockSpec((1, npad), lambda i: (0, 0)),   # targets, row layout
            ],
            out_specs=(
                pl.BlockSpec((1, 1), lambda i: (0, 0)),      # loss accumulator
                pl.BlockSpec((1, 1), lambda i: (0, 0)),      # correct accumulator
            ),
            scratch_shapes=[
                pltpu.VMEM((1, npad), jnp.float32),          # key squared norms
                pltpu.VMEM((1, npad), jnp.float32),          # key inverse norms
            ],
        ),
        compiler_params=pltpu.CompilerParams(
            dimension_semantics=("arbitrary",),              # accumulators revisit outputs
            vmem_limit_bytes=vmem_limit,
        ),
        cost_estimate=cost,
    )(x_pad, x_pad, t_col, t_row)

    return loss[0, 0], correct[0, 0]


if __name__ == "__main__":
    key = jax.random.PRNGKey(0)
    k_x, k_t = jax.random.split(key)

    N, D = 8, 32                                   # batch of 8 embeddings, hidden=32
    x = jax.random.normal(k_x, (N, D), dtype=jnp.float32)
    targets = jax.random.randint(k_t, (N,), 0, 4, dtype=jnp.int32)

    loss, correct = triplet_loss_wrt(x, targets, normalize_feature=False)
    jax.block_until_ready((loss, correct))

    # normalize_feature path
    loss_n, correct_n = triplet_loss_wrt(x, targets, normalize_feature=True)
    jax.block_until_ready((loss_n, correct_n))

    # native-dtype (bf16) path: Gram matmul runs at the MXU's bf16 rate.
    loss_b, correct_b = triplet_loss_wrt(x.astype(jnp.bfloat16), targets)
    jax.block_until_ready((loss_b, correct_b))

    print("KERNEL_OK")
</pallas_src>

<mosaic_0001>
module attributes {stable_mosaic.version = 11 : i64} {
  func.func @_triplet_wrt_kernel(%arg0: i32, %arg1: memref<128x32xf32, #tpu.memory_space<vmem>>, %arg2: memref<128x32xf32, #tpu.memory_space<vmem>>, %arg3: memref<128x1xi32, #tpu.memory_space<vmem>>, %arg4: memref<1x128xi32, #tpu.memory_space<vmem>>, %arg5: memref<1x1xf32, #tpu.memory_space<vmem>>, %arg6: memref<1x1xi32, #tpu.memory_space<vmem>>, %arg7: memref<1x128xf32, #tpu.memory_space<vmem>>, %arg8: memref<1x128xf32, #tpu.memory_space<vmem>>) attributes {dimension_semantics = [#tpu.dimension_semantics<arbitrary>], iteration_bounds = array<i64: 1>, scalar_prefetch = 0 : i64, scratch_operands = 2 : i64, tpu.core_type = #tpu.core_type<tc>, window_params = [{transform_indices = @transform_0, window_bounds = array<i64: 128, 32>}, {pipeline_mode = #tpu.pipeline_mode<synchronous>, transform_indices = @transform_1, window_bounds = array<i64: 128, 32>}, {transform_indices = @transform_2, window_bounds = array<i64: 128, 1>}, {pipeline_mode = #tpu.pipeline_mode<synchronous>, transform_indices = @transform_3, window_bounds = array<i64: 1, 128>}, {pipeline_mode = #tpu.pipeline_mode<synchronous>, transform_indices = @transform_4, window_bounds = array<i64: 1, 1>}, {pipeline_mode = #tpu.pipeline_mode<synchronous>, transform_indices = @transform_5, window_bounds = array<i64: 1, 1>}]} {
    %c128_i32 = arith.constant 128 : i32
    %0 = arith.muli %arg0, %c128_i32 : i32
    %c0_i32 = arith.constant 0 : i32
    %1 = arith.cmpi eq, %arg0, %c0_i32 : i32
    %2 = arith.extui %1 : i1 to i32
    %c0_i32_0 = arith.constant 0 : i32
    %3 = arith.cmpi ne, %2, %c0_i32_0 : i32
    scf.if %3 {
      %c0_44 = arith.constant 0 : index
      %c0_45 = arith.constant 0 : index
      %120 = vector.load %arg2[%c0_44, %c0_45] : memref<128x32xf32, #tpu.memory_space<vmem>>, vector<128x32xf32>
      %121 = arith.mulf %120, %120 : vector<128x32xf32>
      %cst_46 = arith.constant dense<0.000000e+00> : vector<128xf32>
      %122 = vector.multi_reduction <add>, %121, %cst_46 [1] : vector<128x32xf32> to vector<128xf32>
      %123 = vector.shape_cast %122 : vector<128xf32> to vector<128x1xf32>
      %124 = tpu.transpose %123, [1, 0] : vector<128x1xf32> -> vector<1x128xf32>
      %c0_47 = arith.constant 0 : index
      %c0_48 = arith.constant 0 : index
      %125 = vector.load %arg7[%c0_47, %c0_48] : memref<1x128xf32, #tpu.memory_space<vmem>>, vector<1x128xf32>
      tpu.vector_store %arg7[%c0_47, %c0_48], %124 {strides = array<i32>} : memref<1x128xf32, #tpu.memory_space<vmem>>, vector<1x128xf32>,
      %cst_49 = arith.constant 0.000000e+00 : f32
      %126 = vector.broadcast %cst_49 : f32 to vector<1x1xf32>
      %c0_50 = arith.constant 0 : index
      %c0_51 = arith.constant 0 : index
      %127 = vector.load %arg5[%c0_50, %c0_51] : memref<1x1xf32, #tpu.memory_space<vmem>>, vector<1x1xf32>
      tpu.vector_store %arg5[%c0_50, %c0_51], %126 {strides = array<i32>} : memref<1x1xf32, #tpu.memory_space<vmem>>, vector<1x1xf32>,
      %c0_i32_52 = arith.constant 0 : i32
      %128 = vector.broadcast %c0_i32_52 : i32 to vector<1x1xi32>
      %c0_53 = arith.constant 0 : index
      %c0_54 = arith.constant 0 : index
      %129 = vector.load %arg6[%c0_53, %c0_54] : memref<1x1xi32, #tpu.memory_space<vmem>>, vector<1x1xi32>
      tpu.vector_store %arg6[%c0_53, %c0_54], %128 {strides = array<i32>} : memref<1x1xi32, #tpu.memory_space<vmem>>, vector<1x1xi32>,
    } else {
    }
    %c0 = arith.constant 0 : index
    %c0_1 = arith.constant 0 : index
    %4 = vector.load %arg1[%c0, %c0_1] : memref<128x32xf32, #tpu.memory_space<vmem>>, vector<128x32xf32>
    %5 = arith.mulf %4, %4 : vector<128x32xf32>
    %cst = arith.constant dense<0.000000e+00> : vector<128xf32>
    %6 = vector.multi_reduction <add>, %5, %cst [1] : vector<128x32xf32> to vector<128xf32>
    %7 = vector.shape_cast %6 : vector<128xf32> to vector<128x1xf32>
    %c0_2 = arith.constant 0 : index
    %c0_3 = arith.constant 0 : index
    %8 = vector.load %arg2[%c0_2, %c0_3] : memref<128x32xf32, #tpu.memory_space<vmem>>, vector<128x32xf32>
    %cst_4 = arith.constant dense<0.000000e+00> : vector<128x128xf32>
    %9 = tpu.matmul %4, %8, %cst_4 {dimension_numbers = #tpu.dot_dimension_numbers<[1], [1], [0], [0], [0, 0, 1, 0], [], []>} : vector<128x32xf32>, vector<128x32xf32>, vector<128x128xf32> -> vector<128x128xf32>
    %c0_5 = arith.constant 0 : index
    %c0_6 = arith.constant 0 : index
    %10 = vector.load %arg7[%c0_5, %c0_6] : memref<1x128xf32, #tpu.memory_space<vmem>>, vector<1x128xf32>
    %11 = vector.broadcast %7 : vector<128x1xf32> to vector<128x128xf32>
    %12 = vector.broadcast %10 : vector<1x128xf32> to vector<128x128xf32>
    %13 = arith.addf %11, %12 : vector<128x128xf32>
    %cst_7 = arith.constant 2.000000e+00 : f32
    %14 = vector.broadcast %cst_7 : f32 to vector<128x128xf32>
    %15 = arith.mulf %14, %9 : vector<128x128xf32>
    %16 = arith.subf %13, %15 : vector<128x128xf32>
    %cst_8 = arith.constant 9.99999996E-13 : f32
    %17 = vector.broadcast %cst_8 : f32 to vector<128x128xf32>
    %18 = arith.maximumf %16, %17 : vector<128x128xf32>
    %19 = math.sqrt %18 : vector<128x128xf32>
    %c0_9 = arith.constant 0 : index
    %c0_10 = arith.constant 0 : index
    %20 = vector.load %arg3[%c0_9, %c0_10] : memref<128x1xi32, #tpu.memory_space<vmem>>, vector<128x1xi32>
    %c0_11 = arith.constant 0 : index
    %c0_12 = arith.constant 0 : index
    %21 = vector.load %arg4[%c0_11, %c0_12] : memref<1x128xi32, #tpu.memory_space<vmem>>, vector<1x128xi32>
    %22 = tpu.iota {dimensions = array<i32: 1>} : vector<1x128xi32>
    %c8_i32 = arith.constant 8 : i32
    %23 = vector.broadcast %c8_i32 : i32 to vector<1x128xi32>
    %24 = arith.cmpi slt, %22, %23 : vector<1x128xi32>
    %25 = arith.extui %24 : vector<1x128xi1> to vector<1x128xi32>
    %26 = arith.sitofp %25 : vector<1x128xi32> to vector<1x128xf32>
    %27 = vector.broadcast %20 : vector<128x1xi32> to vector<128x128xi32>
    %28 = vector.broadcast %21 : vector<1x128xi32> to vector<128x128xi32>
    %29 = arith.cmpi eq, %27, %28 : vector<128x128xi32>
    %cst_13 = arith.constant 0.000000e+00 : f32
    %30 = vector.shape_cast %26 : vector<1x128xf32> to vector<1x128xf32>
    %31 = vector.broadcast %30 : vector<1x128xf32> to vector<128x128xf32>
    %32 = vector.broadcast %cst_13 : f32 to vector<128x128xf32>
    %33 = arith.select %29, %31, %32 : vector<128x128xi1>, vector<128x128xf32>
    %cst_14 = arith.constant 0.000000e+00 : f32
    %34 = vector.broadcast %cst_14 : f32 to vector<128x128xf32>
    %35 = vector.shape_cast %26 : vector<1x128xf32> to vector<1x128xf32>
    %36 = vector.broadcast %35 : vector<1x128xf32> to vector<128x128xf32>
    %37 = arith.select %29, %34, %36 : vector<128x128xi1>, vector<128x128xf32>
    %38 = arith.mulf %19, %33 : vector<128x128xf32>
    %39 = arith.mulf %19, %37 : vector<128x128xf32>
    %cst_15 = arith.constant dense<0xFF800000> : vector<128xf32>
    %40 = vector.multi_reduction <maximumf>, %38, %cst_15 [1] : vector<128x128xf32> to vector<128xf32>
    %41 = vector.shape_cast %40 : vector<128xf32> to vector<128x1xf32>
    %42 = vector.broadcast %41 : vector<128x1xf32> to vector<128x128xf32>
    %43 = arith.subf %38, %42 : vector<128x128xf32>
    %44 = math.exp %43 : vector<128x128xf32>
    %45 = arith.mulf %44, %33 : vector<128x128xf32>
    %cst_16 = arith.constant dense<0.000000e+00> : vector<128xf32>
    %46 = vector.multi_reduction <add>, %45, %cst_16 [1] : vector<128x128xf32> to vector<128xf32>
    %47 = vector.shape_cast %46 : vector<128xf32> to vector<128x1xf32>
    %cst_17 = arith.constant 9.99999997E-7 : f32
    %48 = vector.broadcast %cst_17 : f32 to vector<128x1xf32>
    %49 = arith.addf %47, %48 : vector<128x1xf32>
    %50 = arith.mulf %38, %45 : vector<128x128xf32>
    %cst_18 = arith.constant dense<0.000000e+00> : vector<128xf32>
    %51 = vector.multi_reduction <add>, %50, %cst_18 [1] : vector<128x128xf32> to vector<128xf32>
    %52 = vector.shape_cast %51 : vector<128xf32> to vector<128x1xf32>
    %53 = tpu.reciprocal %49 {approx = true} : vector<128x1xf32> -> vector<128x1xf32>
    %54 = arith.mulf %52, %53 : vector<128x1xf32>
    %cst_19 = arith.constant 1.250000e-01 : f32
    %55 = vector.broadcast %cst_19 : f32 to vector<128x1xf32>
    %56 = arith.mulf %54, %55 : vector<128x1xf32>
    %cst_20 = arith.constant 0.000000e+00 : f32
    %57 = vector.broadcast %cst_20 : f32 to vector<128x128xf32>
    %58 = arith.subf %57, %39 : vector<128x128xf32>
    %cst_21 = arith.constant dense<0xFF800000> : vector<128xf32>
    %59 = vector.multi_reduction <maximumf>, %58, %cst_21 [1] : vector<128x128xf32> to vector<128xf32>
    %60 = vector.shape_cast %59 : vector<128xf32> to vector<128x1xf32>
    %61 = vector.broadcast %60 : vector<128x1xf32> to vector<128x128xf32>
    %62 = arith.subf %58, %61 : vector<128x128xf32>
    %63 = math.exp %62 : vector<128x128xf32>
    %64 = arith.mulf %63, %37 : vector<128x128xf32>
    %cst_22 = arith.constant dense<0.000000e+00> : vector<128xf32>
    %65 = vector.multi_reduction <add>, %64, %cst_22 [1] : vector<128x128xf32> to vector<128xf32>
    %66 = vector.shape_cast %65 : vector<128xf32> to vector<128x1xf32>
    %cst_23 = arith.constant 9.99999997E-7 : f32
    %67 = vector.broadcast %cst_23 : f32 to vector<128x1xf32>
    %68 = arith.addf %66, %67 : vector<128x1xf32>
    %69 = arith.mulf %39, %64 : vector<128x128xf32>
    %cst_24 = arith.constant dense<0.000000e+00> : vector<128xf32>
    %70 = vector.multi_reduction <add>, %69, %cst_24 [1] : vector<128x128xf32> to vector<128xf32>
    %71 = vector.shape_cast %70 : vector<128xf32> to vector<128x1xf32>
    %72 = tpu.reciprocal %68 {approx = true} : vector<128x1xf32> -> vector<128x1xf32>
    %73 = arith.mulf %71, %72 : vector<128x1xf32>
    %cst_25 = arith.constant 1.250000e-01 : f32
    %74 = vector.broadcast %cst_25 : f32 to vector<128x1xf32>
    %75 = arith.mulf %73, %74 : vector<128x1xf32>
    %76 = arith.subf %75, %56 : vector<128x1xf32>
    %cst_26 = arith.constant 0.000000e+00 : f32
    %77 = vector.broadcast %cst_26 : f32 to vector<128x1xf32>
    %78 = arith.subf %77, %76 : vector<128x1xf32>
    %cst_27 = arith.constant 0.000000e+00 : f32
    %79 = vector.broadcast %cst_27 : f32 to vector<128x1xf32>
    %80 = arith.maximumf %78, %79 : vector<128x1xf32>
    %81 = math.absf %76 : vector<128x1xf32>
    %cst_28 = arith.constant 0.000000e+00 : f32
    %82 = vector.broadcast %cst_28 : f32 to vector<128x1xf32>
    %83 = arith.subf %82, %81 : vector<128x1xf32>
    %84 = math.exp %83 : vector<128x1xf32>
    %85 = math.log1p %84 : vector<128x1xf32>
    %86 = arith.addf %80, %85 : vector<128x1xf32>
    %87 = tpu.iota {dimensions = array<i32: 0>} : vector<128x1xi32>
    %88 = vector.broadcast %0 : i32 to vector<128x1xi32>
    %89 = arith.addi %87, %88 : vector<128x1xi32>
    %c8_i32_29 = arith.constant 8 : i32
    %90 = vector.broadcast %c8_i32_29 : i32 to vector<128x1xi32>
    %91 = arith.cmpi slt, %89, %90 : vector<128x1xi32>
    %92 = arith.extui %91 : vector<128x1xi1> to vector<128x1xi32>
    %93 = arith.sitofp %92 : vector<128x1xi32> to vector<128x1xf32>
    %c0_30 = arith.constant 0 : index
    %c0_31 = arith.constant 0 : index
    %94 = vector.load %arg5[%c0_30, %c0_31] : memref<1x1xf32, #tpu.memory_space<vmem>>, vector<1x1xf32>
    %95 = arith.mulf %86, %93 : vector<128x1xf32>
    %96 = vector.shape_cast %95 : vector<128x1xf32> to vector<1x128x1xf32>
    %cst_32 = arith.constant dense<0.000000e+00> : vector<1xf32>
    %97 = vector.multi_reduction <add>, %96, %cst_32 [1, 2] : vector<1x128x1xf32> to vector<1xf32>
    %98 = vector.shape_cast %97 : vector<1xf32> to vector<1x1x1xf32>
    %99 = vector.extract %98[0, 0, 0] : f32 from vector<1x1x1xf32>
    %100 = vector.broadcast %99 : f32 to vector<1x1xf32>
    %101 = arith.addf %94, %100 : vector<1x1xf32>
    %c0_33 = arith.constant 0 : index
    %c0_34 = arith.constant 0 : index
    %102 = vector.load %arg5[%c0_33, %c0_34] : memref<1x1xf32, #tpu.memory_space<vmem>>, vector<1x1xf32>
    tpu.vector_store %arg5[%c0_33, %c0_34], %101 {strides = array<i32>} : memref<1x1xf32, #tpu.memory_space<vmem>>, vector<1x1xf32>,
    %cst_35 = arith.constant 0.000000e+00 : f32
    %103 = vector.broadcast %cst_35 : f32 to vector<128x1xf32>
    %104 = arith.cmpf oge, %76, %103 : vector<128x1xf32>
    %c8_i32_36 = arith.constant 8 : i32
    %105 = vector.broadcast %c8_i32_36 : i32 to vector<128x1xi32>
    %106 = arith.cmpi slt, %89, %105 : vector<128x1xi32>
    %107 = arith.andi %104, %106 : vector<128x1xi1>
    %c0_37 = arith.constant 0 : index
    %c0_38 = arith.constant 0 : index
    %108 = vector.load %arg6[%c0_37, %c0_38] : memref<1x1xi32, #tpu.memory_space<vmem>>, vector<1x1xi32>
    %109 = arith.extui %107 : vector<128x1xi1> to vector<128x1xi32>
    %110 = vector.shape_cast %109 : vector<128x1xi32> to vector<1x128x1xi32>
    %cst_39 = arith.constant dense<0> : vector<1xi32>
    %111 = vector.multi_reduction <add>, %110, %cst_39 [1, 2] : vector<1x128x1xi32> to vector<1xi32>
    %112 = vector.shape_cast %111 : vector<1xi32> to vector<1x1x1xi32>
    %113 = vector.extract %112[0, 0, 0] : i32 from vector<1x1x1xi32>
    %114 = vector.broadcast %113 : i32 to vector<1x1xi32>
    %115 = arith.addi %108, %114 : vector<1x1xi32>
    %c0_40 = arith.constant 0 : index
    %c0_41 = arith.constant 0 : index
    %116 = vector.load %arg6[%c0_40, %c0_41] : memref<1x1xi32, #tpu.memory_space<vmem>>, vector<1x1xi32>
    tpu.vector_store %arg6[%c0_40, %c0_41], %115 {strides = array<i32>} : memref<1x1xi32, #tpu.memory_space<vmem>>, vector<1x1xi32>,
    %c0_i32_42 = arith.constant 0 : i32
    %117 = arith.cmpi eq, %arg0, %c0_i32_42 : i32
    %118 = arith.extui %117 : i1 to i32
    %c0_i32_43 = arith.constant 0 : i32
    %119 = arith.cmpi ne, %118, %c0_i32_43 : i32
    scf.if %119 {
      %c0_44 = arith.constant 0 : index
      %c0_45 = arith.constant 0 : index
      %120 = vector.load %arg5[%c0_44, %c0_45] : memref<1x1xf32, #tpu.memory_space<vmem>>, vector<1x1xf32>
      %cst_46 = arith.constant 1.250000e-01 : f32
      %121 = vector.broadcast %cst_46 : f32 to vector<1x1xf32>
      %122 = arith.mulf %120, %121 : vector<1x1xf32>
      %c0_47 = arith.constant 0 : index
      %c0_48 = arith.constant 0 : index
      %123 = vector.load %arg5[%c0_47, %c0_48] : memref<1x1xf32, #tpu.memory_space<vmem>>, vector<1x1xf32>
      tpu.vector_store %arg5[%c0_47, %c0_48], %122 {strides = array<i32>} : memref<1x1xf32, #tpu.memory_space<vmem>>, vector<1x1xf32>,
    } else {
    }
    return
  }
  func.func @transform_0(%arg0: i32) -> (i32, i32) {
    %c0_i32 = arith.constant 0 : i32
    %c0_i32_0 = arith.constant 0 : i32
    return %arg0, %c0_i32 : i32, i32
  }
  func.func @transform_1(%arg0: i32) -> (i32, i32) {
    %c0_i32 = arith.constant 0 : i32
    %c0_i32_0 = arith.constant 0 : i32
    %c0_i32_1 = arith.constant 0 : i32
    return %c0_i32, %c0_i32_0 : i32, i32
  }
  func.func @transform_2(%arg0: i32) -> (i32, i32) {
    %c0_i32 = arith.constant 0 : i32
    %c0_i32_0 = arith.constant 0 : i32
    return %arg0, %c0_i32 : i32, i32
  }
  func.func @transform_3(%arg0: i32) -> (i32, i32) {
    %c0_i32 = arith.constant 0 : i32
    %c0_i32_0 = arith.constant 0 : i32
    %c0_i32_1 = arith.constant 0 : i32
    return %c0_i32, %c0_i32_0 : i32, i32
  }
  func.func @transform_4(%arg0: i32) -> (i32, i32) {
    %c0_i32 = arith.constant 0 : i32
    %c0_i32_0 = arith.constant 0 : i32
    %c0_i32_1 = arith.constant 0 : i32
    return %c0_i32, %c0_i32_0 : i32, i32
  }
  func.func @transform_5(%arg0: i32) -> (i32, i32) {
    %c0_i32 = arith.constant 0 : i32
    %c0_i32_0 = arith.constant 0 : i32
    %c0_i32_1 = arith.constant 0 : i32
    return %c0_i32, %c0_i32_0 : i32, i32
  }
}

</mosaic_0001>

<llo_original>
// kernel: tpu_custom_call.1
$region0: #{tpu_custom_call.1}
  #allocation0 [shape = 'u32[]', space=smem, size = 0x4, offset = 0x4, fixed_abs, tag = 'smem constant byte address 0x4 - core index']
  #allocation1 [shape = 'u32[144,128]{1,0:T(1,128)}', space=vmem, size = 0x12000, scoped, tag = 'internal scratch']
  #allocation2 [shape = 'f32[1,128]{1,0:T(1,128)}', space=vmem, size = 0x200, scoped, tag = 'scratch operand']
  #allocation3 [shape = 'f32[1,128]{1,0:T(1,128)}', space=vmem, size = 0x200, scoped, tag = 'scratch operand']
  %s0 = inlined_call_operand.vmem [shape: f32[128,32], index: 0, kind: input, shape index: {}]
  %s1 = inlined_call_operand.vmem [shape: f32[128,32], index: 1, kind: input, shape index: {}]
  %s2 = inlined_call_operand.vmem [shape: s32[128,1], index: 2, kind: input, shape index: {}]
  %s3 = inlined_call_operand.vmem [shape: s32[1,128], index: 3, kind: input, shape index: {}]
  %s4 = inlined_call_operand.hbm [shape: f32[1,1], index: 4, kind: output, shape index: {0}]
  %s5 = inlined_call_operand.hbm [shape: s32[1,1], index: 5, kind: output, shape index: {1}]
  %6 = xla_tuple %s4, %s5
  %s7 = sld [smem:[#allocation0]]
  $region42: #{tpu_custom_call.1} parent=0
    _
  %s9 = ssub.s32 1, %s7
  %s10 = scalar_select 0, %s9, %s7
  $region1: #{tpu_custom_call.1} parent=0
    #allocation4 [shape = 'u8[512]{0}', space=vmem, size = 0x400, scoped, tag = 'output window, operand 0, single buffered']
    #allocation5 [shape = 's32[1]{0}', space=sflag, size = 0x4, scoped, tag = 'scoped memory for tpu_custom_call.1']
    #allocation6 [shape = 'u8[512]{0}', space=vmem, size = 0x400, scoped, tag = 'output window, operand 1, single buffered']
    #allocation7 [shape = 's32[1]{0}', space=sflag, size = 0x4, scoped, tag = 'scoped memory for tpu_custom_call.1']
    %11 = vsyncpa [#allocation5], 0
    %12 = vsyncpa [#allocation7], 0
    // Predicated region
    $region2: #{tpu_custom_call.1} parent=1 // pred_check
      _
    $region3: #{tpu_custom_call.1} parent=1 // pred_check_branch
      %14 = sbr.rel (0) target = $region5
    $region4: #{tpu_custom_call.1} parent=1 // pred_region
      _
    $region5: #{tpu_custom_call.1} parent=1 // pred_fallthru
      _
    // Predicated region
    $region6: #{tpu_custom_call.1} parent=1 // pred_check
      _
    $region7: #{tpu_custom_call.1} parent=1 // pred_check_branch
      %16 = sbr.rel (0) target = $region9
    $region8: #{tpu_custom_call.1} parent=1 // pred_region
      _
    $region9: #{tpu_custom_call.1} parent=1 // pred_fallthru
      _
    // Predicated region
    $region10: #{tpu_custom_call.1} parent=1 // pred_check
      _
    $region11: #{tpu_custom_call.1} parent=1 // pred_check_branch
      %18 = sbr.rel (0) target = $region13
    $region12: #{tpu_custom_call.1} parent=1 // pred_region
      _
    $region13: #{tpu_custom_call.1} parent=1 // pred_fallthru
      _
    // Predicated region
    $region14: #{tpu_custom_call.1} parent=1 // pred_check
      _
    $region15: #{tpu_custom_call.1} parent=1 // pred_check_branch
      %20 = sbr.rel (0) target = $region17
    $region16: #{tpu_custom_call.1} parent=1 // pred_region
      _
    $region17: #{tpu_custom_call.1} parent=1 // pred_fallthru
      _
    %s21 = smul.u32 0, 128
    %p22 = scmp.eq.s32.totalorder 0, 0
    // Predicated region
    $region18: #{tpu_custom_call.1} parent=1 // pred_check
      %p23 = pneg %p22
    $region19: #{tpu_custom_call.1} parent=1 // pred_check_branch
      %25 = sbr.rel (%p23) target = $region21
    $region20: #{tpu_custom_call.1} parent=1 // pred_region
      %v26 = vld [vmem:[%s1] sm:$0xff]
      %v27 = vld [vmem:[%s1 + $0x8] sm:$0xff]
      %v28 = vld [vmem:[%s1 + $0x10] sm:$0xff]
      %v29 = vld [vmem:[%s1 + $0x18] sm:$0xff]
      %v30 = vld [vmem:[%s1 + $0x20] sm:$0xff]
      %v31 = vld [vmem:[%s1 + $0x28] sm:$0xff]
      %v32 = vld [vmem:[%s1 + $0x30] sm:$0xff]
      %v33 = vld [vmem:[%s1 + $0x38] sm:$0xff]
      %v34 = vld [vmem:[%s1 + $0x40] sm:$0xff]
      %v35 = vld [vmem:[%s1 + $0x48] sm:$0xff]
      %v36 = vld [vmem:[%s1 + $0x50] sm:$0xff]
      %v37 = vld [vmem:[%s1 + $0x58] sm:$0xff]
      %v38 = vld [vmem:[%s1 + $0x60] sm:$0xff]
      %v39 = vld [vmem:[%s1 + $0x68] sm:$0xff]
      %v40 = vld [vmem:[%s1 + $0x70] sm:$0xff]
      %v41 = vld [vmem:[%s1 + $0x78] sm:$0xff]
      %v42 = vmul.f32 %v26, %v26
      %v43 = vmul.f32 %v27, %v27
      %v44 = vmul.f32 %v28, %v28
      %v45 = vmul.f32 %v29, %v29
      %v46 = vmul.f32 %v30, %v30
      %v47 = vmul.f32 %v31, %v31
      %v48 = vmul.f32 %v32, %v32
      %v49 = vmul.f32 %v33, %v33
      %v50 = vmul.f32 %v34, %v34
      %v51 = vmul.f32 %v35, %v35
      %v52 = vmul.f32 %v36, %v36
      %v53 = vmul.f32 %v37, %v37
      %v54 = vmul.f32 %v38, %v38
      %v55 = vmul.f32 %v39, %v39
      %v56 = vmul.f32 %v40, %v40
      %v57 = vmul.f32 %v41, %v41
      %vm58 = vcmask 261120
      %v59 = vsel %vm58, %v42, 0.0
      %60 = vadd.xlane.f32.xlu0 %v59
      %v61 = vpop.xlane.xlu0 %60
      %v62 = vsel %vm58, %v43, 0.0
      %63 = vadd.xlane.f32.xlu0 %v62
      %v64 = vpop.xlane.xlu0 %63
      %v65 = vsel %vm58, %v44, 0.0
      %66 = vadd.xlane.f32.xlu0 %v65
      %v67 = vpop.xlane.xlu0 %66
      %v68 = vsel %vm58, %v45, 0.0
      %69 = vadd.xlane.f32.xlu0 %v68
      %v70 = vpop.xlane.xlu0 %69
      %v71 = vsel %vm58, %v46, 0.0
      %72 = vadd.xlane.f32.xlu0 %v71
      %v73 = vpop.xlane.xlu0 %72
      %v74 = vsel %vm58, %v47, 0.0
      %75 = vadd.xlane.f32.xlu0 %v74
      %v76 = vpop.xlane.xlu0 %75
      %v77 = vsel %vm58, %v48, 0.0
      %78 = vadd.xlane.f32.xlu0 %v77
      %v79 = vpop.xlane.xlu0 %78
      %v80 = vsel %vm58, %v49, 0.0
      %81 = vadd.xlane.f32.xlu0 %v80
      %v82 = vpop.xlane.xlu0 %81
      %v83 = vsel %vm58, %v50, 0.0
      %84 = vadd.xlane.f32.xlu0 %v83
      %v85 = vpop.xlane.xlu0 %84
      %v86 = vsel %vm58, %v51, 0.0
      %87 = vadd.xlane.f32.xlu0 %v86
      %v88 = vpop.xlane.xlu0 %87
      %v89 = vsel %vm58, %v52, 0.0
      %90 = vadd.xlane.f32.xlu0 %v89
      %v91 = vpop.xlane.xlu0 %90
      %v92 = vsel %vm58, %v53, 0.0
      %93 = vadd.xlane.f32.xlu0 %v92
      %v94 = vpop.xlane.xlu0 %93
      %v95 = vsel %vm58, %v54, 0.0
      %96 = vadd.xlane.f32.xlu0 %v95
      %v97 = vpop.xlane.xlu0 %96
      %v98 = vsel %vm58, %v55, 0.0
      %99 = vadd.xlane.f32.xlu0 %v98
      %v100 = vpop.xlane.xlu0 %99
      %v101 = vsel %vm58, %v56, 0.0
      %102 = vadd.xlane.f32.xlu0 %v101
      %v103 = vpop.xlane.xlu0 %102
      %v104 = vsel %vm58, %v57, 0.0
      %105 = vadd.xlane.f32.xlu0 %v104
      %v106 = vpop.xlane.xlu0 %105
      %107 = vxpose.xlu0.b32.start [1/16] %v61, 128
      %108 = vxpose.xlu0.b32.cont [2/16] %v64, 128
      %109 = vxpose.xlu0.b32.cont [3/16] %v67, 128
      %110 = vxpose.xlu0.b32.cont [4/16] %v70, 128
      %111 = vxpose.xlu0.b32.cont [5/16] %v73, 128
      %112 = vxpose.xlu0.b32.cont [6/16] %v76, 128
      %113 = vxpose.xlu0.b32.cont [7/16] %v79, 128
      %114 = vxpose.xlu0.b32.cont [8/16] %v82, 128
      %115 = vxpose.xlu0.b32.cont [9/16] %v85, 128
      %116 = vxpose.xlu0.b32.cont [10/16] %v88, 128
      %117 = vxpose.xlu0.b32.cont [11/16] %v91, 128
      %118 = vxpose.xlu0.b32.cont [12/16] %v94, 128
      %119 = vxpose.xlu0.b32.cont [13/16] %v97, 128
      %120 = vxpose.xlu0.b32.cont [14/16] %v100, 128
      %121 = vxpose.xlu0.b32.cont [15/16] %v103, 128
      %122 = vxpose.xlu0.b32.end [16/16] %v106, 128
      %v123 = vpop.trf.xlu0
      %v124 = vpop.trf.xlu0
      %v125 = vpop.trf.xlu0
      %v126 = vpop.trf.xlu0
      %v127 = vpop.trf.xlu0
      %v128 = vpop.trf.xlu0
      %v129 = vpop.trf.xlu0
      %v130 = vpop.trf.xlu0
      %v131 = vpop.trf.xlu0
      %v132 = vpop.trf.xlu0
      %v133 = vpop.trf.xlu0
      %v134 = vpop.trf.xlu0
      %v135 = vpop.trf.xlu0
      %v136 = vpop.trf.xlu0
      %v137 = vpop.trf.xlu0
      %v138 = vpop.trf.xlu0
      %139 = vst [vmem:[#allocation2] sm:$0x1] %v123
      %vm140 = vcmask 0
      %141 = vst.msk [vmem:[#allocation4] sm:$0x1] %vm140, 0.0
      %142 = vst.msk [vmem:[#allocation6] sm:$0x1] %vm140, 0
    $region21: #{tpu_custom_call.1} parent=1 // pred_fallthru
      _
    %v143 = vld [vmem:[%s0] sm:$0xff]
    %v144 = vld [vmem:[%s0 + $0x8] sm:$0xff]
    %v145 = vld [vmem:[%s0 + $0x10] sm:$0xff]
    %v146 = vld [vmem:[%s0 + $0x18] sm:$0xff]
    %v147 = vld [vmem:[%s0 + $0x20] sm:$0xff]
    %v148 = vld [vmem:[%s0 + $0x28] sm:$0xff]
    %v149 = vld [vmem:[%s0 + $0x30] sm:$0xff]
    %v150 = vld [vmem:[%s0 + $0x38] sm:$0xff]
    %v151 = vld [vmem:[%s0 + $0x40] sm:$0xff]
    %v152 = vld [vmem:[%s0 + $0x48] sm:$0xff]
    %v153 = vld [vmem:[%s0 + $0x50] sm:$0xff]
    %v154 = vld [vmem:[%s0 + $0x58] sm:$0xff]
    %v155 = vld [vmem:[%s0 + $0x60] sm:$0xff]
    %v156 = vld [vmem:[%s0 + $0x68] sm:$0xff]
    %v157 = vld [vmem:[%s0 + $0x70] sm:$0xff]
    %v158 = vld [vmem:[%s0 + $0x78] sm:$0xff]
    %v159 = vmul.f32 %v143, %v143
    %v160 = vmul.f32 %v144, %v144
    %v161 = vmul.f32 %v145, %v145
    %v162 = vmul.f32 %v146, %v146
    %v163 = vmul.f32 %v147, %v147
    %v164 = vmul.f32 %v148, %v148
    %v165 = vmul.f32 %v149, %v149
    %v166 = vmul.f32 %v150, %v150
    %v167 = vmul.f32 %v151, %v151
    %v168 = vmul.f32 %v152, %v152
    %v169 = vmul.f32 %v153, %v153
    %v170 = vmul.f32 %v154, %v154
    %v171 = vmul.f32 %v155, %v155
    %v172 = vmul.f32 %v156, %v156
    %v173 = vmul.f32 %v157, %v157
    %v174 = vmul.f32 %v158, %v158
    %vm175 = vcmask 261120
    %v176 = vsel %vm175, %v159, 0.0
    %177 = vadd.xlane.f32.xlu0 %v176
    %v178 = vpop.xlane.xlu0 %177
    %v179 = vsel %vm175, %v160, 0.0
    %180 = vadd.xlane.f32.xlu0 %v179
    %v181 = vpop.xlane.xlu0 %180
    %v182 = vsel %vm175, %v161, 0.0
    %183 = vadd.xlane.f32.xlu0 %v182
    %v184 = vpop.xlane.xlu0 %183
    %v185 = vsel %vm175, %v162, 0.0
    %186 = vadd.xlane.f32.xlu0 %v185
    %v187 = vpop.xlane.xlu0 %186
    %v188 = vsel %vm175, %v163, 0.0
    %189 = vadd.xlane.f32.xlu0 %v188
    %v190 = vpop.xlane.xlu0 %189
    %v191 = vsel %vm175, %v164, 0.0
    %192 = vadd.xlane.f32.xlu0 %v191
    %v193 = vpop.xlane.xlu0 %192
    %v194 = vsel %vm175, %v165, 0.0
    %195 = vadd.xlane.f32.xlu0 %v194
    %v196 = vpop.xlane.xlu0 %195
    %v197 = vsel %vm175, %v166, 0.0
    %198 = vadd.xlane.f32.xlu0 %v197
    %v199 = vpop.xlane.xlu0 %198
    %v200 = vsel %vm175, %v167, 0.0
    %201 = vadd.xlane.f32.xlu0 %v200
    %v202 = vpop.xlane.xlu0 %201
    %v203 = vsel %vm175, %v168, 0.0
    %204 = vadd.xlane.f32.xlu0 %v203
    %v205 = vpop.xlane.xlu0 %204
    %v206 = vsel %vm175, %v169, 0.0
    %207 = vadd.xlane.f32.xlu0 %v206
    %v208 = vpop.xlane.xlu0 %207
    %v209 = vsel %vm175, %v170, 0.0
    %210 = vadd.xlane.f32.xlu0 %v209
    %v211 = vpop.xlane.xlu0 %210
    %v212 = vsel %vm175, %v171, 0.0
    %213 = vadd.xlane.f32.xlu0 %v212
    %v214 = vpop.xlane.xlu0 %213
    %v215 = vsel %vm175, %v172, 0.0
    %216 = vadd.xlane.f32.xlu0 %v215
    %v217 = vpop.xlane.xlu0 %216
    %v218 = vsel %vm175, %v173, 0.0
    %219 = vadd.xlane.f32.xlu0 %v218
    %v220 = vpop.xlane.xlu0 %219
    %v221 = vsel %vm175, %v174, 0.0
    %222 = vadd.xlane.f32.xlu0 %v221
    %v223 = vpop.xlane.xlu0 %222
    %v224 = vld [vmem:[%s1] sm:$0xff]
    %v225 = vld [vmem:[%s1 + $0x8] sm:$0xff]
    %v226 = vld [vmem:[%s1 + $0x10] sm:$0xff]
    %v227 = vld [vmem:[%s1 + $0x18] sm:$0xff]
    %v228 = vld [vmem:[%s1 + $0x20] sm:$0xff]
    %v229 = vld [vmem:[%s1 + $0x28] sm:$0xff]
    %v230 = vld [vmem:[%s1 + $0x30] sm:$0xff]
    %v231 = vld [vmem:[%s1 + $0x38] sm:$0xff]
    %v232 = vld [vmem:[%s1 + $0x40] sm:$0xff]
    %v233 = vld [vmem:[%s1 + $0x48] sm:$0xff]
    %v234 = vld [vmem:[%s1 + $0x50] sm:$0xff]
    %v235 = vld [vmem:[%s1 + $0x58] sm:$0xff]
    %v236 = vld [vmem:[%s1 + $0x60] sm:$0xff]
    %v237 = vld [vmem:[%s1 + $0x68] sm:$0xff]
    %v238 = vld [vmem:[%s1 + $0x70] sm:$0xff]
    %v239 = vld [vmem:[%s1 + $0x78] sm:$0xff]
    %v241 = vsel %vm175, %v143, 0
    %v244 = vsel %vm175, %v144, 0
    %v247 = vsel %vm175, %v145, 0
    %v250 = vsel %vm175, %v146, 0
    %v253 = vsel %vm175, %v147, 0
    %v256 = vsel %vm175, %v148, 0
    %v259 = vsel %vm175, %v149, 0
    %v262 = vsel %vm175, %v150, 0
    %v265 = vsel %vm175, %v151, 0
    %v268 = vsel %vm175, %v152, 0
    %v271 = vsel %vm175, %v153, 0
    %v274 = vsel %vm175, %v154, 0
    %v277 = vsel %vm175, %v155, 0
    %v280 = vsel %vm175, %v156, 0
    %v283 = vsel %vm175, %v157, 0
    %v286 = vsel %vm175, %v158, 0
    %v289 = vsel %vm175, %v224, 0
    %v292 = vsel %vm175, %v225, 0
    %v295 = vsel %vm175, %v226, 0
    %v298 = vsel %vm175, %v227, 0
    %v301 = vsel %vm175, %v228, 0
    %v304 = vsel %vm175, %v229, 0
    %v307 = vsel %vm175, %v230, 0
    %v310 = vsel %vm175, %v231, 0
    %v313 = vsel %vm175, %v232, 0
    %v316 = vsel %vm175, %v233, 0
    %v319 = vsel %vm175, %v234, 0
    %v322 = vsel %vm175, %v235, 0
    %v325 = vsel %vm175, %v236, 0
    %v328 = vsel %vm175, %v237, 0
    %v331 = vsel %vm175, %v238, 0
    %v334 = vsel %vm175, %v239, 0
    %336 = vmatprep.subr.mxu0 0.0
    %337 = vmatpush1.xpose.msra.mxu0 %v289
    %338 = vmatprep.subr.mxu0 0.0
    %339 = vmatpush1.xpose.msra.mxu0 %v292
    %340 = vmatprep.subr.mxu0 0.0
    %341 = vmatpush1.xpose.msra.mxu0 %v295
    %342 = vmatprep.subr.mxu0 0.0
    %343 = vmatpush1.xpose.msra.mxu0 %v298
    %344 = vmatprep.subr.mxu0 0.0
    %345 = vmatpush1.xpose.msra.mxu0 %v301
    %346 = vmatprep.subr.mxu0 0.0
    %347 = vmatpush1.xpose.msra.mxu0 %v304
    %348 = vmatprep.subr.mxu0 0.0
    %349 = vmatpush1.xpose.msra.mxu0 %v307
    %350 = vmatprep.subr.mxu0 0.0
    %351 = vmatpush1.xpose.msra.mxu0 %v310
    %352 = vmatprep.subr.mxu0 0.0
    %353 = vmatpush1.xpose.msra.mxu0 %v313
    %354 = vmatprep.subr.mxu0 0.0
    %355 = vmatpush1.xpose.msra.mxu0 %v316
    %356 = vmatprep.subr.mxu0 0.0
    %357 = vmatpush1.xpose.msra.mxu0 %v319
    %358 = vmatprep.subr.mxu0 0.0
    %359 = vmatpush1.xpose.msra.mxu0 %v322
    %360 = vmatprep.subr.mxu0 0.0
    %361 = vmatpush1.xpose.msra.mxu0 %v325
    %362 = vmatprep.subr.mxu0 0.0
    %363 = vmatpush1.xpose.msra.mxu0 %v328
    %364 = vmatprep.subr.mxu0 0.0
    %365 = vmatpush1.xpose.msra.mxu0 %v331
    %366 = vmatprep.subr.mxu0 0.0
    %367 = vmatpush1.xpose.msra.mxu0 %v334
    %368 = vmatprep.subr.mxu0 0.0
    %369 = vmatpush1.xpose.msra.mxu0 0.0
    %370 = vmatprep.subr.mxu0 0.0
    %371 = vmatpush1.xpose.msra.mxu0 0.0
    %372 = vmatprep.subr.mxu0 0.0
    %373 = vmatpush1.xpose.msra.mxu0 0.0
    %374 = vmatprep.subr.mxu0 0.0
    %375 = vmatpush1.xpose.msra.mxu0 0.0
    %376 = vmatprep.subr.mxu0 0.0
    %377 = vmatpush1.xpose.msra.mxu0 0.0
    %378 = vmatprep.subr.mxu0 0.0
    %379 = vmatpush1.xpose.msra.mxu0 0.0
    %380 = vmatprep.subr.mxu0 0.0
    %381 = vmatpush1.xpose.msra.mxu0 0.0
    %382 = vmatprep.subr.mxu0 0.0
    %383 = vmatpush1.xpose.msra.mxu0 0.0
    %384 = vmatprep.subr.mxu0 0.0
    %385 = vmatpush1.xpose.msra.mxu0 0.0
    %386 = vmatprep.subr.mxu0 0.0
    %387 = vmatpush1.xpose.msra.mxu0 0.0
    %388 = vmatprep.subr.mxu0 0.0
    %389 = vmatpush1.xpose.msra.mxu0 0.0
    %390 = vmatprep.subr.mxu0 0.0
    %391 = vmatpush1.xpose.msra.mxu0 0.0
    %392 = vmatprep.subr.mxu0 0.0
    %393 = vmatpush1.xpose.msra.mxu0 0.0
    %394 = vmatprep.subr.mxu0 0.0
    %395 = vmatpush1.xpose.msra.mxu0 0.0
    %396 = vmatprep.subr.mxu0 0.0
    %397 = vmatpush1.xpose.msra.mxu0 0.0
    %398 = vmatprep.subr.mxu0 0.0
    %399 = vmatpush1.xpose.msra.mxu0 0.0
    %400 = vmatprep.mubr.f32.mxu0 0.0
    %401 = vmatmul.mubr.f32.gmra.mrb[0].mxu0 %v241
    %v402 = vpop.f32.mrb[0].mxu0
    %v403 = vadd.f32 0.0, %v402
    %v404 = vpop.f32.mrb[0].mxu0
    %405 = vmatprep.mubr.f32.mxu0 0.0
    %406 = vmatmul.mubr.f32.gmra.mrb[0].mxu0 %v244
    %v407 = vpop.f32.mrb[0].mxu0
    %v408 = vadd.f32 0.0, %v407
    %v409 = vpop.f32.mrb[0].mxu0
    %410 = vmatprep.mubr.f32.mxu0 0.0
    %411 = vmatmul.mubr.f32.gmra.mrb[0].mxu0 %v247
    %v412 = vpop.f32.mrb[0].mxu0
    %v413 = vadd.f32 0.0, %v412
    %v414 = vpop.f32.mrb[0].mxu0
    %415 = vmatprep.mubr.f32.mxu0 0.0
    %416 = vmatmul.mubr.f32.gmra.mrb[0].mxu0 %v250
    %v417 = vpop.f32.mrb[0].mxu0
    %v418 = vadd.f32 0.0, %v417
    %v419 = vpop.f32.mrb[0].mxu0
    %420 = vmatprep.mubr.f32.mxu0 0.0
    %421 = vmatmul.mubr.f32.gmra.mrb[0].mxu0 %v253
    %v422 = vpop.f32.mrb[0].mxu0
    %v423 = vadd.f32 0.0, %v422
    %v424 = vpop.f32.mrb[0].mxu0
    %425 = vmatprep.mubr.f32.mxu0 0.0
    %426 = vmatmul.mubr.f32.gmra.mrb[0].mxu0 %v256
    %v427 = vpop.f32.mrb[0].mxu0
    %v428 = vadd.f32 0.0, %v427
    %v429 = vpop.f32.mrb[0].mxu0
    %430 = vmatprep.mubr.f32.mxu0 0.0
    %431 = vmatmul.mubr.f32.gmra.mrb[0].mxu0 %v259
    %v432 = vpop.f32.mrb[0].mxu0
    %v433 = vadd.f32 0.0, %v432
    %v434 = vpop.f32.mrb[0].mxu0
    %435 = vmatprep.mubr.f32.mxu0 0.0
    %436 = vmatmul.mubr.f32.gmra.mrb[0].mxu0 %v262
    %v437 = vpop.f32.mrb[0].mxu0
    %v438 = vadd.f32 0.0, %v437
    %v439 = vpop.f32.mrb[0].mxu0
    %440 = vmatprep.mubr.f32.mxu0 0.0
    %441 = vmatmul.mubr.f32.gmra.mrb[0].mxu0 %v265
    %v442 = vpop.f32.mrb[0].mxu0
    %v443 = vadd.f32 0.0, %v442
    %v444 = vpop.f32.mrb[0].mxu0
    %445 = vmatprep.mubr.f32.mxu0 0.0
    %446 = vmatmul.mubr.f32.gmra.mrb[0].mxu0 %v268
    %v447 = vpop.f32.mrb[0].mxu0
    %v448 = vadd.f32 0.0, %v447
    %v449 = vpop.f32.mrb[0].mxu0
    %450 = vmatprep.mubr.f32.mxu0 0.0
    %451 = vmatmul.mubr.f32.gmra.mrb[0].mxu0 %v271
    %v452 = vpop.f32.mrb[0].mxu0
    %v453 = vadd.f32 0.0, %v452
    %v454 = vpop.f32.mrb[0].mxu0
    %455 = vmatprep.mubr.f32.mxu0 0.0
    %456 = vmatmul.mubr.f32.gmra.mrb[0].mxu0 %v274
    %v457 = vpop.f32.mrb[0].mxu0
    %v458 = vadd.f32 0.0, %v457
    %v459 = vpop.f32.mrb[0].mxu0
    %460 = vmatprep.mubr.f32.mxu0 0.0
    %461 = vmatmul.mubr.f32.gmra.mrb[0].mxu0 %v277
    %v462 = vpop.f32.mrb[0].mxu0
    %v463 = vadd.f32 0.0, %v462
    %v464 = vpop.f32.mrb[0].mxu0
    %465 = vmatprep.mubr.f32.mxu0 0.0
    %466 = vmatmul.mubr.f32.gmra.mrb[0].mxu0 %v280
    %v467 = vpop.f32.mrb[0].mxu0
    %v468 = vadd.f32 0.0, %v467
    %v469 = vpop.f32.mrb[0].mxu0
    %470 = vmatprep.mubr.f32.mxu0 0.0
    %471 = vmatmul.mubr.f32.gmra.mrb[0].mxu0 %v283
    %v472 = vpop.f32.mrb[0].mxu0
    %v473 = vadd.f32 0.0, %v472
    %v474 = vpop.f32.mrb[0].mxu0
    %475 = vmatprep.mubr.f32.mxu0 0.0
    %476 = vmatmul.mubr.f32.gmra.mrb[0].mxu0 %v286
    %v477 = vpop.f32.mrb[0].mxu0
    %v478 = vadd.f32 0.0, %v477
    %v479 = vpop.f32.mrb[0].mxu0
    %480 = vdwg.mxu0
    %v481 = vld [vmem:[#allocation2] sm:$0x1]
    %v483 = vlaneseq
    %v484 = vshrl.u32 %v483, 7
    %v485 = vsub.s32 0, %v484
    %v486 = vrot.slane %v481, %v485
    %v488 = vadd.f32 %v178, %v486
    %v489 = vadd.f32 %v181, %v486
    %v490 = vadd.f32 %v184, %v486
    %v491 = vadd.f32 %v187, %v486
    %v492 = vadd.f32 %v190, %v486
    %v493 = vadd.f32 %v193, %v486
    %v494 = vadd.f32 %v196, %v486
    %v495 = vadd.f32 %v199, %v486
    %v496 = vadd.f32 %v202, %v486
    %v497 = vadd.f32 %v205, %v486
    %v498 = vadd.f32 %v208, %v486
    %v499 = vadd.f32 %v211, %v486
    %v500 = vadd.f32 %v214, %v486
    %v501 = vadd.f32 %v217, %v486
    %v502 = vadd.f32 %v220, %v486
    %v503 = vadd.f32 %v223, %v486
    %v504 = vmul.f32 %v403, 2.0
    %v505 = vmul.f32 %v408, 2.0
    %v506 = vmul.f32 %v413, 2.0
    %v507 = vmul.f32 %v418, 2.0
    %v508 = vmul.f32 %v423, 2.0
    %v509 = vmul.f32 %v428, 2.0
    %v510 = vmul.f32 %v433, 2.0
    %v511 = vmul.f32 %v438, 2.0
    %v512 = vmul.f32 %v443, 2.0
    %v513 = vmul.f32 %v448, 2.0
    %v514 = vmul.f32 %v453, 2.0
    %v515 = vmul.f32 %v458, 2.0
    %v516 = vmul.f32 %v463, 2.0
    %v517 = vmul.f32 %v468, 2.0
    %v518 = vmul.f32 %v473, 2.0
    %v519 = vmul.f32 %v478, 2.0
    %v520 = vsub.f32 %v488, %v504
    %v521 = vsub.f32 %v489, %v505
    %v522 = vsub.f32 %v490, %v506
    %v523 = vsub.f32 %v491, %v507
    %v524 = vsub.f32 %v492, %v508
    %v525 = vsub.f32 %v493, %v509
    %v526 = vsub.f32 %v494, %v510
    %v527 = vsub.f32 %v495, %v511
    %v528 = vsub.f32 %v496, %v512
    %v529 = vsub.f32 %v497, %v513
    %v530 = vsub.f32 %v498, %v514
    %v531 = vsub.f32 %v499, %v515
    %v532 = vsub.f32 %v500, %v516
    %v533 = vsub.f32 %v501, %v517
    %v534 = vsub.f32 %v502, %v518
    %v535 = vsub.f32 %v503, %v519
    %v536 = vmax.f32 %v520, 1e-12
    %v537 = vmax.f32 %v521, 1e-12
    %v538 = vmax.f32 %v522, 1e-12
    %v539 = vmax.f32 %v523, 1e-12
    %v540 = vmax.f32 %v524, 1e-12
    %v541 = vmax.f32 %v525, 1e-12
    %v542 = vmax.f32 %v526, 1e-12
    %v543 = vmax.f32 %v527, 1e-12
    %v544 = vmax.f32 %v528, 1e-12
    %v545 = vmax.f32 %v529, 1e-12
    %v546 = vmax.f32 %v530, 1e-12
    %v547 = vmax.f32 %v531, 1e-12
    %v548 = vmax.f32 %v532, 1e-12
    %v549 = vmax.f32 %v533, 1e-12
    %v550 = vmax.f32 %v534, 1e-12
    %v551 = vmax.f32 %v535, 1e-12
    %v552 = vrsqrt.pop %v536
    %v553 = vmul.f32 %v536, %v552
    %vm554 = vcmp.eq.f32.partialorder %v536, inf
    %v555 = vsel %vm554, %v536, %v553
    %vm556 = vcmp.eq.f32.partialorder %v536, 0.0
    %v557 = vand.u32 %v536, 2147483648
    %v558 = vsel %vm556, %v557, %v555
    %v559 = vrsqrt.pop %v537
    %v560 = vmul.f32 %v537, %v559
    %vm561 = vcmp.eq.f32.partialorder %v537, inf
    %v562 = vsel %vm561, %v537, %v560
    %vm563 = vcmp.eq.f32.partialorder %v537, 0.0
    %v564 = vand.u32 %v537, 2147483648
    %v565 = vsel %vm563, %v564, %v562
    %v566 = vrsqrt.pop %v538
    %v567 = vmul.f32 %v538, %v566
    %vm568 = vcmp.eq.f32.partialorder %v538, inf
    %v569 = vsel %vm568, %v538, %v567
    %vm570 = vcmp.eq.f32.partialorder %v538, 0.0
    %v571 = vand.u32 %v538, 2147483648
    %v572 = vsel %vm570, %v571, %v569
    %v573 = vrsqrt.pop %v539
    %v574 = vmul.f32 %v539, %v573
    %vm575 = vcmp.eq.f32.partialorder %v539, inf
    %v576 = vsel %vm575, %v539, %v574
    %vm577 = vcmp.eq.f32.partialorder %v539, 0.0
    %v578 = vand.u32 %v539, 2147483648
    %v579 = vsel %vm577, %v578, %v576
    %v580 = vrsqrt.pop %v540
    %v581 = vmul.f32 %v540, %v580
    %vm582 = vcmp.eq.f32.partialorder %v540, inf
    %v583 = vsel %vm582, %v540, %v581
    %vm584 = vcmp.eq.f32.partialorder %v540, 0.0
    %v585 = vand.u32 %v540, 2147483648
    %v586 = vsel %vm584, %v585, %v583
    %v587 = vrsqrt.pop %v541
    %v588 = vmul.f32 %v541, %v587
    %vm589 = vcmp.eq.f32.partialorder %v541, inf
    %v590 = vsel %vm589, %v541, %v588
    %vm591 = vcmp.eq.f32.partialorder %v541, 0.0
    %v592 = vand.u32 %v541, 2147483648
    %v593 = vsel %vm591, %v592, %v590
    %v594 = vrsqrt.pop %v542
    %v595 = vmul.f32 %v542, %v594
    %vm596 = vcmp.eq.f32.partialorder %v542, inf
    %v597 = vsel %vm596, %v542, %v595
    %vm598 = vcmp.eq.f32.partialorder %v542, 0.0
    %v599 = vand.u32 %v542, 2147483648
    %v600 = vsel %vm598, %v599, %v597
    %v601 = vrsqrt.pop %v543
    %v602 = vmul.f32 %v543, %v601
    %vm603 = vcmp.eq.f32.partialorder %v543, inf
    %v604 = vsel %vm603, %v543, %v602
    %vm605 = vcmp.eq.f32.partialorder %v543, 0.0
    %v606 = vand.u32 %v543, 2147483648
    %v607 = vsel %vm605, %v606, %v604
    %v608 = vrsqrt.pop %v544
    %v609 = vmul.f32 %v544, %v608
    %vm610 = vcmp.eq.f32.partialorder %v544, inf
    %v611 = vsel %vm610, %v544, %v609
    %vm612 = vcmp.eq.f32.partialorder %v544, 0.0
    %v613 = vand.u32 %v544, 2147483648
    %v614 = vsel %vm612, %v613, %v611
    %v615 = vrsqrt.pop %v545
    %v616 = vmul.f32 %v545, %v615
    %vm617 = vcmp.eq.f32.partialorder %v545, inf
    %v618 = vsel %vm617, %v545, %v616
    %vm619 = vcmp.eq.f32.partialorder %v545, 0.0
    %v620 = vand.u32 %v545, 2147483648
    %v621 = vsel %vm619, %v620, %v618
    %v622 = vrsqrt.pop %v546
    %v623 = vmul.f32 %v546, %v622
    %vm624 = vcmp.eq.f32.partialorder %v546, inf
    %v625 = vsel %vm624, %v546, %v623
    %vm626 = vcmp.eq.f32.partialorder %v546, 0.0
    %v627 = vand.u32 %v546, 2147483648
    %v628 = vsel %vm626, %v627, %v625
    %v629 = vrsqrt.pop %v547
    %v630 = vmul.f32 %v547, %v629
    %vm631 = vcmp.eq.f32.partialorder %v547, inf
    %v632 = vsel %vm631, %v547, %v630
    %vm633 = vcmp.eq.f32.partialorder %v547, 0.0
    %v634 = vand.u32 %v547, 2147483648
    %v635 = vsel %vm633, %v634, %v632
    %v636 = vrsqrt.pop %v548
    %v637 = vmul.f32 %v548, %v636
    %vm638 = vcmp.eq.f32.partialorder %v548, inf
    %v639 = vsel %vm638, %v548, %v637
    %vm640 = vcmp.eq.f32.partialorder %v548, 0.0
    %v641 = vand.u32 %v548, 2147483648
    %v642 = vsel %vm640, %v641, %v639
    %v643 = vrsqrt.pop %v549
    %v644 = vmul.f32 %v549, %v643
    %vm645 = vcmp.eq.f32.partialorder %v549, inf
    %v646 = vsel %vm645, %v549, %v644
    %vm647 = vcmp.eq.f32.partialorder %v549, 0.0
    %v648 = vand.u32 %v549, 2147483648
    %v649 = vsel %vm647, %v648, %v646
    %v650 = vrsqrt.pop %v550
    %v651 = vmul.f32 %v550, %v650
    %vm652 = vcmp.eq.f32.partialorder %v550, inf
    %v653 = vsel %vm652, %v550, %v651
    %vm654 = vcmp.eq.f32.partialorder %v550, 0.0
    %v655 = vand.u32 %v550, 2147483648
    %v656 = vsel %vm654, %v655, %v653
    %v657 = vrsqrt.pop %v551
    %v658 = vmul.f32 %v551, %v657
    %vm659 = vcmp.eq.f32.partialorder %v551, inf
    %v660 = vsel %vm659, %v551, %v658
    %vm661 = vcmp.eq.f32.partialorder %v551, 0.0
    %v662 = vand.u32 %v551, 2147483648
    %v663 = vsel %vm661, %v662, %v660
    %v664 = vld [vmem:[%s2] sm:$0xff]
    %v665 = vld [vmem:[%s2 + $0x8] sm:$0xff]
    %v666 = vld [vmem:[%s2 + $0x10] sm:$0xff]
    %v667 = vld [vmem:[%s2 + $0x18] sm:$0xff]
    %v668 = vld [vmem:[%s2 + $0x20] sm:$0xff]
    %v669 = vld [vmem:[%s2 + $0x28] sm:$0xff]
    %v670 = vld [vmem:[%s2 + $0x30] sm:$0xff]
    %v671 = vld [vmem:[%s2 + $0x38] sm:$0xff]
    %v672 = vld [vmem:[%s2 + $0x40] sm:$0xff]
    %v673 = vld [vmem:[%s2 + $0x48] sm:$0xff]
    %v674 = vld [vmem:[%s2 + $0x50] sm:$0xff]
    %v675 = vld [vmem:[%s2 + $0x58] sm:$0xff]
    %v676 = vld [vmem:[%s2 + $0x60] sm:$0xff]
    %v677 = vld [vmem:[%s2 + $0x68] sm:$0xff]
    %v678 = vld [vmem:[%s2 + $0x70] sm:$0xff]
    %v679 = vld [vmem:[%s2 + $0x78] sm:$0xff]
    %v680 = vld [vmem:[%s3] sm:$0x1]
    %v681 = vlaneseq
    %v682 = vand.u32 %v681, 127
    %vm683 = vcmp.lt.s32.totalorder %v682, 8
    %v684 = vsel %vm683, 1, 0
    %v685 = vcvt.s32.f32 %v684
    %686 = vset.pattern.permute.xlu0 0
    %687 = vperm.xlu0 %686, %v664
    %v688 = vpop.permute.xlu0 %687
    %689 = vset.pattern.permute.xlu0 0
    %690 = vperm.xlu0 %689, %v665
    %v691 = vpop.permute.xlu0 %690
    %692 = vset.pattern.permute.xlu0 0
    %693 = vperm.xlu0 %692, %v666
    %v694 = vpop.permute.xlu0 %693
    %695 = vset.pattern.permute.xlu0 0
    %696 = vperm.xlu0 %695, %v667
    %v697 = vpop.permute.xlu0 %696
    %698 = vset.pattern.permute.xlu0 0
    %699 = vperm.xlu0 %698, %v668
    %v700 = vpop.permute.xlu0 %699
    %701 = vset.pattern.permute.xlu0 0
    %702 = vperm.xlu0 %701, %v669
    %v703 = vpop.permute.xlu0 %702
    %704 = vset.pattern.permute.xlu0 0
    %705 = vperm.xlu0 %704, %v670
    %v706 = vpop.permute.xlu0 %705
    %707 = vset.pattern.permute.xlu0 0
    %708 = vperm.xlu0 %707, %v671
    %v709 = vpop.permute.xlu0 %708
    %710 = vset.pattern.permute.xlu0 0
    %711 = vperm.xlu0 %710, %v672
    %v712 = vpop.permute.xlu0 %711
    %713 = vset.pattern.permute.xlu0 0
    %714 = vperm.xlu0 %713, %v673
    %v715 = vpop.permute.xlu0 %714
    %716 = vset.pattern.permute.xlu0 0
    %717 = vperm.xlu0 %716, %v674
    %v718 = vpop.permute.xlu0 %717
    %719 = vset.pattern.permute.xlu0 0
    %720 = vperm.xlu0 %719, %v675
    %v721 = vpop.permute.xlu0 %720
    %722 = vset.pattern.permute.xlu0 0
    %723 = vperm.xlu0 %722, %v676
    %v724 = vpop.permute.xlu0 %723
    %725 = vset.pattern.permute.xlu0 0
    %726 = vperm.xlu0 %725, %v677
    %v727 = vpop.permute.xlu0 %726
    %728 = vset.pattern.permute.xlu0 0
    %729 = vperm.xlu0 %728, %v678
    %v730 = vpop.permute.xlu0 %729
    %731 = vset.pattern.permute.xlu0 0
    %732 = vperm.xlu0 %731, %v679
    %v733 = vpop.permute.xlu0 %732
    %v734 = vlaneseq
    %v735 = vshrl.u32 %v734, 7
    %v736 = vsub.s32 0, %v735
    %v737 = vrot.slane %v680, %v736
    %vm738 = vcmp.eq.s32.totalorder %v688, %v737
    %vm739 = vcmp.eq.s32.totalorder %v691, %v737
    %vm740 = vcmp.eq.s32.totalorder %v694, %v737
    %vm741 = vcmp.eq.s32.totalorder %v697, %v737
    %vm742 = vcmp.eq.s32.totalorder %v700, %v737
    %vm743 = vcmp.eq.s32.totalorder %v703, %v737
    %vm744 = vcmp.eq.s32.totalorder %v706, %v737
    %vm745 = vcmp.eq.s32.totalorder %v709, %v737
    %vm746 = vcmp.eq.s32.totalorder %v712, %v737
    %vm747 = vcmp.eq.s32.totalorder %v715, %v737
    %vm748 = vcmp.eq.s32.totalorder %v718, %v737
    %vm749 = vcmp.eq.s32.totalorder %v721, %v737
    %vm750 = vcmp.eq.s32.totalorder %v724, %v737
    %vm751 = vcmp.eq.s32.totalorder %v727, %v737
    %vm752 = vcmp.eq.s32.totalorder %v730, %v737
    %vm753 = vcmp.eq.s32.totalorder %v733, %v737
    %v754 = vsel %vm738, %v685, 0.0
    %v755 = vsel %vm739, %v685, 0.0
    %v756 = vsel %vm740, %v685, 0.0
    %v757 = vsel %vm741, %v685, 0.0
    %v758 = vsel %vm742, %v685, 0.0
    %v759 = vsel %vm743, %v685, 0.0
    %v760 = vsel %vm744, %v685, 0.0
    %v761 = vsel %vm745, %v685, 0.0
    %v762 = vsel %vm746, %v685, 0.0
    %v763 = vsel %vm747, %v685, 0.0
    %v764 = vsel %vm748, %v685, 0.0
    %v765 = vsel %vm749, %v685, 0.0
    %v766 = vsel %vm750, %v685, 0.0
    %v767 = vsel %vm751, %v685, 0.0
    %v768 = vsel %vm752, %v685, 0.0
    %v769 = vsel %vm753, %v685, 0.0
    %v770 = vsel %vm738, 0.0, %v685
    %v771 = vsel %vm739, 0.0, %v685
    %v772 = vsel %vm740, 0.0, %v685
    %v773 = vsel %vm741, 0.0, %v685
    %v774 = vsel %vm742, 0.0, %v685
    %v775 = vsel %vm743, 0.0, %v685
    %v776 = vsel %vm744, 0.0, %v685
    %v777 = vsel %vm745, 0.0, %v685
    %v778 = vsel %vm746, 0.0, %v685
    %v779 = vsel %vm747, 0.0, %v685
    %v780 = vsel %vm748, 0.0, %v685
    %v781 = vsel %vm749, 0.0, %v685
    %v782 = vsel %vm750, 0.0, %v685
    %v783 = vsel %vm751, 0.0, %v685
    %v784 = vsel %vm752, 0.0, %v685
    %v785 = vsel %vm753, 0.0, %v685
    %v786 = vmul.f32 %v558, %v754
    %v787 = vmul.f32 %v565, %v755
    %v788 = vmul.f32 %v572, %v756
    %v789 = vmul.f32 %v579, %v757
    %v790 = vmul.f32 %v586, %v758
    %v791 = vmul.f32 %v593, %v759
    %v792 = vmul.f32 %v600, %v760
    %v793 = vmul.f32 %v607, %v761
    %v794 = vmul.f32 %v614, %v762
    %v795 = vmul.f32 %v621, %v763
    %v796 = vmul.f32 %v628, %v764
    %v797 = vmul.f32 %v635, %v765
    %v798 = vmul.f32 %v642, %v766
    %v799 = vmul.f32 %v649, %v767
    %v800 = vmul.f32 %v656, %v768
    %v801 = vmul.f32 %v663, %v769
    %v802 = vmul.f32 %v558, %v770
    %v803 = vmul.f32 %v565, %v771
    %v804 = vmul.f32 %v572, %v772
    %v805 = vmul.f32 %v579, %v773
    %v806 = vmul.f32 %v586, %v774
    %v807 = vmul.f32 %v593, %v775
    %v808 = vmul.f32 %v600, %v776
    %v809 = vmul.f32 %v607, %v777
    %v810 = vmul.f32 %v614, %v778
    %v811 = vmul.f32 %v621, %v779
    %v812 = vmul.f32 %v628, %v780
    %v813 = vmul.f32 %v635, %v781
    %v814 = vmul.f32 %v642, %v782
    %v815 = vmul.f32 %v649, %v783
    %v816 = vmul.f32 %v656, %v784
    %v817 = vmul.f32 %v663, %v785
    %818 = vmax.xlane.f32.xlu0 %v786
    %v819 = vpop.xlane.xlu0 %818
    %820 = vmax.xlane.f32.xlu0 %v787
    %v821 = vpop.xlane.xlu0 %820
    %822 = vmax.xlane.f32.xlu0 %v788
    %v823 = vpop.xlane.xlu0 %822
    %824 = vmax.xlane.f32.xlu0 %v789
    %v825 = vpop.xlane.xlu0 %824
    %826 = vmax.xlane.f32.xlu0 %v790
    %v827 = vpop.xlane.xlu0 %826
    %828 = vmax.xlane.f32.xlu0 %v791
    %v829 = vpop.xlane.xlu0 %828
    %830 = vmax.xlane.f32.xlu0 %v792
    %v831 = vpop.xlane.xlu0 %830
    %832 = vmax.xlane.f32.xlu0 %v793
    %v833 = vpop.xlane.xlu0 %832
    %834 = vmax.xlane.f32.xlu0 %v794
    %v835 = vpop.xlane.xlu0 %834
    %836 = vmax.xlane.f32.xlu0 %v795
    %v837 = vpop.xlane.xlu0 %836
    %838 = vmax.xlane.f32.xlu0 %v796
    %v839 = vpop.xlane.xlu0 %838
    %840 = vmax.xlane.f32.xlu0 %v797
    %v841 = vpop.xlane.xlu0 %840
    %842 = vmax.xlane.f32.xlu0 %v798
    %v843 = vpop.xlane.xlu0 %842
    %844 = vmax.xlane.f32.xlu0 %v799
    %v845 = vpop.xlane.xlu0 %844
    %846 = vmax.xlane.f32.xlu0 %v800
    %v847 = vpop.xlane.xlu0 %846
    %848 = vmax.xlane.f32.xlu0 %v801
    %v849 = vpop.xlane.xlu0 %848
    %v850 = vsub.f32 %v786, %v819
    %v851 = vsub.f32 %v787, %v821
    %v852 = vsub.f32 %v788, %v823
    %v853 = vsub.f32 %v789, %v825
    %v854 = vsub.f32 %v790, %v827
    %v855 = vsub.f32 %v791, %v829
    %v856 = vsub.f32 %v792, %v831
    %v857 = vsub.f32 %v793, %v833
    %v858 = vsub.f32 %v794, %v835
    %v859 = vsub.f32 %v795, %v837
    %v860 = vsub.f32 %v796, %v839
    %v861 = vsub.f32 %v797, %v841
    %v862 = vsub.f32 %v798, %v843
    %v863 = vsub.f32 %v799, %v845
    %v864 = vsub.f32 %v800, %v847
    %v865 = vsub.f32 %v801, %v849
    %v866 = vmul.f32 %v850, 1.442695
    %v867 = vpow.pop %v866
    %v868 = vmul.f32 %v851, 1.442695
    %v869 = vpow.pop %v868
    %v870 = vmul.f32 %v852, 1.442695
    %v871 = vpow.pop %v870
    %v872 = vmul.f32 %v853, 1.442695
    %v873 = vpow.pop %v872
    %v874 = vmul.f32 %v854, 1.442695
    %v875 = vpow.pop %v874
    %v876 = vmul.f32 %v855, 1.442695
    %v877 = vpow.pop %v876
    %v878 = vmul.f32 %v856, 1.442695
    %v879 = vpow.pop %v878
    %v880 = vmul.f32 %v857, 1.442695
    %v881 = vpow.pop %v880
    %v882 = vmul.f32 %v858, 1.442695
    %v883 = vpow.pop %v882
    %v884 = vmul.f32 %v859, 1.442695
    %v885 = vpow.pop %v884
    %v886 = vmul.f32 %v860, 1.442695
    %v887 = vpow.pop %v886
    %v888 = vmul.f32 %v861, 1.442695
    %v889 = vpow.pop %v888
    %v890 = vmul.f32 %v862, 1.442695
    %v891 = vpow.pop %v890
    %v892 = vmul.f32 %v863, 1.442695
    %v893 = vpow.pop %v892
    %v894 = vmul.f32 %v864, 1.442695
    %v895 = vpow.pop %v894
    %v896 = vmul.f32 %v865, 1.442695
    %v897 = vpow.pop %v896
    %v898 = vmul.f32 %v867, %v754
    %v899 = vmul.f32 %v869, %v755
    %v900 = vmul.f32 %v871, %v756
    %v901 = vmul.f32 %v873, %v757
    %v902 = vmul.f32 %v875, %v758
    %v903 = vmul.f32 %v877, %v759
    %v904 = vmul.f32 %v879, %v760
    %v905 = vmul.f32 %v881, %v761
    %v906 = vmul.f32 %v883, %v762
    %v907 = vmul.f32 %v885, %v763
    %v908 = vmul.f32 %v887, %v764
    %v909 = vmul.f32 %v889, %v765
    %v910 = vmul.f32 %v891, %v766
    %v911 = vmul.f32 %v893, %v767
    %v912 = vmul.f32 %v895, %v768
    %v913 = vmul.f32 %v897, %v769
    %914 = vadd.xlane.f32.xlu0 %v898
    %v915 = vpop.xlane.xlu0 %914
    %916 = vadd.xlane.f32.xlu0 %v899
    %v917 = vpop.xlane.xlu0 %916
    %918 = vadd.xlane.f32.xlu0 %v900
    %v919 = vpop.xlane.xlu0 %918
    %920 = vadd.xlane.f32.xlu0 %v901
    %v921 = vpop.xlane.xlu0 %920
    %922 = vadd.xlane.f32.xlu0 %v902
    %v923 = vpop.xlane.xlu0 %922
    %924 = vadd.xlane.f32.xlu0 %v903
    %v925 = vpop.xlane.xlu0 %924
    %926 = vadd.xlane.f32.xlu0 %v904
    %v927 = vpop.xlane.xlu0 %926
    %928 = vadd.xlane.f32.xlu0 %v905
    %v929 = vpop.xlane.xlu0 %928
    %930 = vadd.xlane.f32.xlu0 %v906
    %v931 = vpop.xlane.xlu0 %930
    %932 = vadd.xlane.f32.xlu0 %v907
    %v933 = vpop.xlane.xlu0 %932
    %934 = vadd.xlane.f32.xlu0 %v908
    %v935 = vpop.xlane.xlu0 %934
    %936 = vadd.xlane.f32.xlu0 %v909
    %v937 = vpop.xlane.xlu0 %936
    %938 = vadd.xlane.f32.xlu0 %v910
    %v939 = vpop.xlane.xlu0 %938
    %940 = vadd.xlane.f32.xlu0 %v911
    %v941 = vpop.xlane.xlu0 %940
    %942 = vadd.xlane.f32.xlu0 %v912
    %v943 = vpop.xlane.xlu0 %942
    %944 = vadd.xlane.f32.xlu0 %v913
    %v945 = vpop.xlane.xlu0 %944
    %v946 = vadd.f32 %v915, 1e-06
    %v947 = vadd.f32 %v917, 1e-06
    %v948 = vadd.f32 %v919, 1e-06
    %v949 = vadd.f32 %v921, 1e-06
    %v950 = vadd.f32 %v923, 1e-06
    %v951 = vadd.f32 %v925, 1e-06
    %v952 = vadd.f32 %v927, 1e-06
    %v953 = vadd.f32 %v929, 1e-06
    %v954 = vadd.f32 %v931, 1e-06
    %v955 = vadd.f32 %v933, 1e-06
    %v956 = vadd.f32 %v935, 1e-06
    %v957 = vadd.f32 %v937, 1e-06
    %v958 = vadd.f32 %v939, 1e-06
    %v959 = vadd.f32 %v941, 1e-06
    %v960 = vadd.f32 %v943, 1e-06
    %v961 = vadd.f32 %v945, 1e-06
    %v962 = vmul.f32 %v786, %v898
    %v963 = vmul.f32 %v787, %v899
    %v964 = vmul.f32 %v788, %v900
    %v965 = vmul.f32 %v789, %v901
    %v966 = vmul.f32 %v790, %v902
    %v967 = vmul.f32 %v791, %v903
    %v968 = vmul.f32 %v792, %v904
    %v969 = vmul.f32 %v793, %v905
    %v970 = vmul.f32 %v794, %v906
    %v971 = vmul.f32 %v795, %v907
    %v972 = vmul.f32 %v796, %v908
    %v973 = vmul.f32 %v797, %v909
    %v974 = vmul.f32 %v798, %v910
    %v975 = vmul.f32 %v799, %v911
    %v976 = vmul.f32 %v800, %v912
    %v977 = vmul.f32 %v801, %v913
    %978 = vadd.xlane.f32.xlu0 %v962
    %v979 = vpop.xlane.xlu0 %978
    %980 = vadd.xlane.f32.xlu0 %v963
    %v981 = vpop.xlane.xlu0 %980
    %982 = vadd.xlane.f32.xlu0 %v964
    %v983 = vpop.xlane.xlu0 %982
    %984 = vadd.xlane.f32.xlu0 %v965
    %v985 = vpop.xlane.xlu0 %984
    %986 = vadd.xlane.f32.xlu0 %v966
    %v987 = vpop.xlane.xlu0 %986
    %988 = vadd.xlane.f32.xlu0 %v967
    %v989 = vpop.xlane.xlu0 %988
    %990 = vadd.xlane.f32.xlu0 %v968
    %v991 = vpop.xlane.xlu0 %990
    %992 = vadd.xlane.f32.xlu0 %v969
    %v993 = vpop.xlane.xlu0 %992
    %994 = vadd.xlane.f32.xlu0 %v970
    %v995 = vpop.xlane.xlu0 %994
    %996 = vadd.xlane.f32.xlu0 %v971
    %v997 = vpop.xlane.xlu0 %996
    %998 = vadd.xlane.f32.xlu0 %v972
    %v999 = vpop.xlane.xlu0 %998
    %1000 = vadd.xlane.f32.xlu0 %v973
    %v1001 = vpop.xlane.xlu0 %1000
    %1002 = vadd.xlane.f32.xlu0 %v974
    %v1003 = vpop.xlane.xlu0 %1002
    %1004 = vadd.xlane.f32.xlu0 %v975
    %v1005 = vpop.xlane.xlu0 %1004
    %1006 = vadd.xlane.f32.xlu0 %v976
    %v1007 = vpop.xlane.xlu0 %1006
    %1008 = vadd.xlane.f32.xlu0 %v977
    %v1009 = vpop.xlane.xlu0 %1008
    %v1010 = vrcp.pop %v946
    %v1011 = vrcp.pop %v947
    %v1012 = vrcp.pop %v948
    %v1013 = vrcp.pop %v949
    %v1014 = vrcp.pop %v950
    %v1015 = vrcp.pop %v951
    %v1016 = vrcp.pop %v952
    %v1017 = vrcp.pop %v953
    %v1018 = vrcp.pop %v954
    %v1019 = vrcp.pop %v955
    %v1020 = vrcp.pop %v956
    %v1021 = vrcp.pop %v957
    %v1022 = vrcp.pop %v958
    %v1023 = vrcp.pop %v959
    %v1024 = vrcp.pop %v960
    %v1025 = vrcp.pop %v961
    %v1026 = vmul.f32 %v979, %v1010
    %v1027 = vmul.f32 %v981, %v1011
    %v1028 = vmul.f32 %v983, %v1012
    %v1029 = vmul.f32 %v985, %v1013
    %v1030 = vmul.f32 %v987, %v1014
    %v1031 = vmul.f32 %v989, %v1015
    %v1032 = vmul.f32 %v991, %v1016
    %v1033 = vmul.f32 %v993, %v1017
    %v1034 = vmul.f32 %v995, %v1018
    %v1035 = vmul.f32 %v997, %v1019
    %v1036 = vmul.f32 %v999, %v1020
    %v1037 = vmul.f32 %v1001, %v1021
    %v1038 = vmul.f32 %v1003, %v1022
    %v1039 = vmul.f32 %v1005, %v1023
    %v1040 = vmul.f32 %v1007, %v1024
    %v1041 = vmul.f32 %v1009, %v1025
    %v1042 = vmul.f32 %v1026, 0.125
    %v1043 = vmul.f32 %v1027, 0.125
    %v1044 = vmul.f32 %v1028, 0.125
    %v1045 = vmul.f32 %v1029, 0.125
    %v1046 = vmul.f32 %v1030, 0.125
    %v1047 = vmul.f32 %v1031, 0.125
    %v1048 = vmul.f32 %v1032, 0.125
    %v1049 = vmul.f32 %v1033, 0.125
    %v1050 = vmul.f32 %v1034, 0.125
    %v1051 = vmul.f32 %v1035, 0.125
    %v1052 = vmul.f32 %v1036, 0.125
    %v1053 = vmul.f32 %v1037, 0.125
    %v1054 = vmul.f32 %v1038, 0.125
    %v1055 = vmul.f32 %v1039, 0.125
    %v1056 = vmul.f32 %v1040, 0.125
    %v1057 = vmul.f32 %v1041, 0.125
    %v1058 = vsub.f32 0.0, %v802
    %v1059 = vsub.f32 0.0, %v803
    %v1060 = vsub.f32 0.0, %v804
    %v1061 = vsub.f32 0.0, %v805
    %v1062 = vsub.f32 0.0, %v806
    %v1063 = vsub.f32 0.0, %v807
    %v1064 = vsub.f32 0.0, %v808
    %v1065 = vsub.f32 0.0, %v809
    %v1066 = vsub.f32 0.0, %v810
    %v1067 = vsub.f32 0.0, %v811
    %v1068 = vsub.f32 0.0, %v812
    %v1069 = vsub.f32 0.0, %v813
    %v1070 = vsub.f32 0.0, %v814
    %v1071 = vsub.f32 0.0, %v815
    %v1072 = vsub.f32 0.0, %v816
    %v1073 = vsub.f32 0.0, %v817
    %1074 = vmax.xlane.f32.xlu0 %v1058
    %v1075 = vpop.xlane.xlu0 %1074
    %1076 = vmax.xlane.f32.xlu0 %v1059
    %v1077 = vpop.xlane.xlu0 %1076
    %1078 = vmax.xlane.f32.xlu0 %v1060
    %v1079 = vpop.xlane.xlu0 %1078
    %1080 = vmax.xlane.f32.xlu0 %v1061
    %v1081 = vpop.xlane.xlu0 %1080
    %1082 = vmax.xlane.f32.xlu0 %v1062
    %v1083 = vpop.xlane.xlu0 %1082
    %1084 = vmax.xlane.f32.xlu0 %v1063
    %v1085 = vpop.xlane.xlu0 %1084
    %1086 = vmax.xlane.f32.xlu0 %v1064
    %v1087 = vpop.xlane.xlu0 %1086
    %1088 = vmax.xlane.f32.xlu0 %v1065
    %v1089 = vpop.xlane.xlu0 %1088
    %1090 = vmax.xlane.f32.xlu0 %v1066
    %v1091 = vpop.xlane.xlu0 %1090
    %1092 = vmax.xlane.f32.xlu0 %v1067
    %v1093 = vpop.xlane.xlu0 %1092
    %1094 = vmax.xlane.f32.xlu0 %v1068
    %v1095 = vpop.xlane.xlu0 %1094
    %1096 = vmax.xlane.f32.xlu0 %v1069
    %v1097 = vpop.xlane.xlu0 %1096
    %1098 = vmax.xlane.f32.xlu0 %v1070
    %v1099 = vpop.xlane.xlu0 %1098
    %1100 = vmax.xlane.f32.xlu0 %v1071
    %v1101 = vpop.xlane.xlu0 %1100
    %1102 = vmax.xlane.f32.xlu0 %v1072
    %v1103 = vpop.xlane.xlu0 %1102
    %1104 = vmax.xlane.f32.xlu0 %v1073
    %v1105 = vpop.xlane.xlu0 %1104
    %v1106 = vsub.f32 %v1058, %v1075
    %v1107 = vsub.f32 %v1059, %v1077
    %v1108 = vsub.f32 %v1060, %v1079
    %v1109 = vsub.f32 %v1061, %v1081
    %v1110 = vsub.f32 %v1062, %v1083
    %v1111 = vsub.f32 %v1063, %v1085
    %v1112 = vsub.f32 %v1064, %v1087
    %v1113 = vsub.f32 %v1065, %v1089
    %v1114 = vsub.f32 %v1066, %v1091
    %v1115 = vsub.f32 %v1067, %v1093
    %v1116 = vsub.f32 %v1068, %v1095
    %v1117 = vsub.f32 %v1069, %v1097
    %v1118 = vsub.f32 %v1070, %v1099
    %v1119 = vsub.f32 %v1071, %v1101
    %v1120 = vsub.f32 %v1072, %v1103
    %v1121 = vsub.f32 %v1073, %v1105
    %v1122 = vmul.f32 %v1106, 1.442695
    %v1123 = vpow.pop %v1122
    %v1124 = vmul.f32 %v1107, 1.442695
    %v1125 = vpow.pop %v1124
    %v1126 = vmul.f32 %v1108, 1.442695
    %v1127 = vpow.pop %v1126
    %v1128 = vmul.f32 %v1109, 1.442695
    %v1129 = vpow.pop %v1128
    %v1130 = vmul.f32 %v1110, 1.442695
    %v1131 = vpow.pop %v1130
    %v1132 = vmul.f32 %v1111, 1.442695
    %v1133 = vpow.pop %v1132
    %v1134 = vmul.f32 %v1112, 1.442695
    %v1135 = vpow.pop %v1134
    %v1136 = vmul.f32 %v1113, 1.442695
    %v1137 = vpow.pop %v1136
    %v1138 = vmul.f32 %v1114, 1.442695
    %v1139 = vpow.pop %v1138
    %v1140 = vmul.f32 %v1115, 1.442695
    %v1141 = vpow.pop %v1140
    %v1142 = vmul.f32 %v1116, 1.442695
    %v1143 = vpow.pop %v1142
    %v1144 = vmul.f32 %v1117, 1.442695
    %v1145 = vpow.pop %v1144
    %v1146 = vmul.f32 %v1118, 1.442695
    %v1147 = vpow.pop %v1146
    %v1148 = vmul.f32 %v1119, 1.442695
    %v1149 = vpow.pop %v1148
    %v1150 = vmul.f32 %v1120, 1.442695
    %v1151 = vpow.pop %v1150
    %v1152 = vmul.f32 %v1121, 1.442695
    %v1153 = vpow.pop %v1152
    %v1154 = vmul.f32 %v1123, %v770
    %v1155 = vmul.f32 %v1125, %v771
    %v1156 = vmul.f32 %v1127, %v772
    %v1157 = vmul.f32 %v1129, %v773
    %v1158 = vmul.f32 %v1131, %v774
    %v1159 = vmul.f32 %v1133, %v775
    %v1160 = vmul.f32 %v1135, %v776
    %v1161 = vmul.f32 %v1137, %v777
    %v1162 = vmul.f32 %v1139, %v778
    %v1163 = vmul.f32 %v1141, %v779
    %v1164 = vmul.f32 %v1143, %v780
    %v1165 = vmul.f32 %v1145, %v781
    %v1166 = vmul.f32 %v1147, %v782
    %v1167 = vmul.f32 %v1149, %v783
    %v1168 = vmul.f32 %v1151, %v784
    %v1169 = vmul.f32 %v1153, %v785
    %1170 = vadd.xlane.f32.xlu0 %v1154
    %v1171 = vpop.xlane.xlu0 %1170
    %1172 = vadd.xlane.f32.xlu0 %v1155
    %v1173 = vpop.xlane.xlu0 %1172
    %1174 = vadd.xlane.f32.xlu0 %v1156
    %v1175 = vpop.xlane.xlu0 %1174
    %1176 = vadd.xlane.f32.xlu0 %v1157
    %v1177 = vpop.xlane.xlu0 %1176
    %1178 = vadd.xlane.f32.xlu0 %v1158
    %v1179 = vpop.xlane.xlu0 %1178
    %1180 = vadd.xlane.f32.xlu0 %v1159
    %v1181 = vpop.xlane.xlu0 %1180
    %1182 = vadd.xlane.f32.xlu0 %v1160
    %v1183 = vpop.xlane.xlu0 %1182
    %1184 = vadd.xlane.f32.xlu0 %v1161
    %v1185 = vpop.xlane.xlu0 %1184
    %1186 = vadd.xlane.f32.xlu0 %v1162
    %v1187 = vpop.xlane.xlu0 %1186
    %1188 = vadd.xlane.f32.xlu0 %v1163
    %v1189 = vpop.xlane.xlu0 %1188
    %1190 = vadd.xlane.f32.xlu0 %v1164
    %v1191 = vpop.xlane.xlu0 %1190
    %1192 = vadd.xlane.f32.xlu0 %v1165
    %v1193 = vpop.xlane.xlu0 %1192
    %1194 = vadd.xlane.f32.xlu0 %v1166
    %v1195 = vpop.xlane.xlu0 %1194
    %1196 = vadd.xlane.f32.xlu0 %v1167
    %v1197 = vpop.xlane.xlu0 %1196
    %1198 = vadd.xlane.f32.xlu0 %v1168
    %v1199 = vpop.xlane.xlu0 %1198
    %1200 = vadd.xlane.f32.xlu0 %v1169
    %v1201 = vpop.xlane.xlu0 %1200
    %v1202 = vadd.f32 %v1171, 1e-06
    %v1203 = vadd.f32 %v1173, 1e-06
    %v1204 = vadd.f32 %v1175, 1e-06
    %v1205 = vadd.f32 %v1177, 1e-06
    %v1206 = vadd.f32 %v1179, 1e-06
    %v1207 = vadd.f32 %v1181, 1e-06
    %v1208 = vadd.f32 %v1183, 1e-06
    %v1209 = vadd.f32 %v1185, 1e-06
    %v1210 = vadd.f32 %v1187, 1e-06
    %v1211 = vadd.f32 %v1189, 1e-06
    %v1212 = vadd.f32 %v1191, 1e-06
    %v1213 = vadd.f32 %v1193, 1e-06
    %v1214 = vadd.f32 %v1195, 1e-06
    %v1215 = vadd.f32 %v1197, 1e-06
    %v1216 = vadd.f32 %v1199, 1e-06
    %v1217 = vadd.f32 %v1201, 1e-06
    %v1218 = vmul.f32 %v802, %v1154
    %v1219 = vmul.f32 %v803, %v1155
    %v1220 = vmul.f32 %v804, %v1156
    %v1221 = vmul.f32 %v805, %v1157
    %v1222 = vmul.f32 %v806, %v1158
    %v1223 = vmul.f32 %v807, %v1159
    %v1224 = vmul.f32 %v808, %v1160
    %v1225 = vmul.f32 %v809, %v1161
    %v1226 = vmul.f32 %v810, %v1162
    %v1227 = vmul.f32 %v811, %v1163
    %v1228 = vmul.f32 %v812, %v1164
    %v1229 = vmul.f32 %v813, %v1165
    %v1230 = vmul.f32 %v814, %v1166
    %v1231 = vmul.f32 %v815, %v1167
    %v1232 = vmul.f32 %v816, %v1168
    %v1233 = vmul.f32 %v817, %v1169
    %1234 = vadd.xlane.f32.xlu0 %v1218
    %v1235 = vpop.xlane.xlu0 %1234
    %1236 = vadd.xlane.f32.xlu0 %v1219
    %v1237 = vpop.xlane.xlu0 %1236
    %1238 = vadd.xlane.f32.xlu0 %v1220
    %v1239 = vpop.xlane.xlu0 %1238
    %1240 = vadd.xlane.f32.xlu0 %v1221
    %v1241 = vpop.xlane.xlu0 %1240
    %1242 = vadd.xlane.f32.xlu0 %v1222
    %v1243 = vpop.xlane.xlu0 %1242
    %1244 = vadd.xlane.f32.xlu0 %v1223
    %v1245 = vpop.xlane.xlu0 %1244
    %1246 = vadd.xlane.f32.xlu0 %v1224
    %v1247 = vpop.xlane.xlu0 %1246
    %1248 = vadd.xlane.f32.xlu0 %v1225
    %v1249 = vpop.xlane.xlu0 %1248
    %1250 = vadd.xlane.f32.xlu0 %v1226
    %v1251 = vpop.xlane.xlu0 %1250
    %1252 = vadd.xlane.f32.xlu0 %v1227
    %v1253 = vpop.xlane.xlu0 %1252
    %1254 = vadd.xlane.f32.xlu0 %v1228
    %v1255 = vpop.xlane.xlu0 %1254
    %1256 = vadd.xlane.f32.xlu0 %v1229
    %v1257 = vpop.xlane.xlu0 %1256
    %1258 = vadd.xlane.f32.xlu0 %v1230
    %v1259 = vpop.xlane.xlu0 %1258
    %1260 = vadd.xlane.f32.xlu0 %v1231
    %v1261 = vpop.xlane.xlu0 %1260
    %1262 = vadd.xlane.f32.xlu0 %v1232
    %v1263 = vpop.xlane.xlu0 %1262
    %1264 = vadd.xlane.f32.xlu0 %v1233
    %v1265 = vpop.xlane.xlu0 %1264
    %v1266 = vrcp.pop %v1202
    %v1267 = vrcp.pop %v1203
    %v1268 = vrcp.pop %v1204
    %v1269 = vrcp.pop %v1205
    %v1270 = vrcp.pop %v1206
    %v1271 = vrcp.pop %v1207
    %v1272 = vrcp.pop %v1208
    %v1273 = vrcp.pop %v1209
    %v1274 = vrcp.pop %v1210
    %v1275 = vrcp.pop %v1211
    %v1276 = vrcp.pop %v1212
    %v1277 = vrcp.pop %v1213
    %v1278 = vrcp.pop %v1214
    %v1279 = vrcp.pop %v1215
    %v1280 = vrcp.pop %v1216
    %v1281 = vrcp.pop %v1217
    %v1282 = vmul.f32 %v1235, %v1266
    %v1283 = vmul.f32 %v1237, %v1267
    %v1284 = vmul.f32 %v1239, %v1268
    %v1285 = vmul.f32 %v1241, %v1269
    %v1286 = vmul.f32 %v1243, %v1270
    %v1287 = vmul.f32 %v1245, %v1271
    %v1288 = vmul.f32 %v1247, %v1272
    %v1289 = vmul.f32 %v1249, %v1273
    %v1290 = vmul.f32 %v1251, %v1274
    %v1291 = vmul.f32 %v1253, %v1275
    %v1292 = vmul.f32 %v1255, %v1276
    %v1293 = vmul.f32 %v1257, %v1277
    %v1294 = vmul.f32 %v1259, %v1278
    %v1295 = vmul.f32 %v1261, %v1279
    %v1296 = vmul.f32 %v1263, %v1280
    %v1297 = vmul.f32 %v1265, %v1281
    %v1298 = vmul.f32 %v1282, 0.125
    %v1299 = vmul.f32 %v1283, 0.125
    %v1300 = vmul.f32 %v1284, 0.125
    %v1301 = vmul.f32 %v1285, 0.125
    %v1302 = vmul.f32 %v1286, 0.125
    %v1303 = vmul.f32 %v1287, 0.125
    %v1304 = vmul.f32 %v1288, 0.125
    %v1305 = vmul.f32 %v1289, 0.125
    %v1306 = vmul.f32 %v1290, 0.125
    %v1307 = vmul.f32 %v1291, 0.125
    %v1308 = vmul.f32 %v1292, 0.125
    %v1309 = vmul.f32 %v1293, 0.125
    %v1310 = vmul.f32 %v1294, 0.125
    %v1311 = vmul.f32 %v1295, 0.125
    %v1312 = vmul.f32 %v1296, 0.125
    %v1313 = vmul.f32 %v1297, 0.125
    %v1314 = vsub.f32 %v1298, %v1042
    %v1315 = vsub.f32 %v1299, %v1043
    %v1316 = vsub.f32 %v1300, %v1044
    %v1317 = vsub.f32 %v1301, %v1045
    %v1318 = vsub.f32 %v1302, %v1046
    %v1319 = vsub.f32 %v1303, %v1047
    %v1320 = vsub.f32 %v1304, %v1048
    %v1321 = vsub.f32 %v1305, %v1049
    %v1322 = vsub.f32 %v1306, %v1050
    %v1323 = vsub.f32 %v1307, %v1051
    %v1324 = vsub.f32 %v1308, %v1052
    %v1325 = vsub.f32 %v1309, %v1053
    %v1326 = vsub.f32 %v1310, %v1054
    %v1327 = vsub.f32 %v1311, %v1055
    %v1328 = vsub.f32 %v1312, %v1056
    %v1329 = vsub.f32 %v1313, %v1057
    %v1330 = vsub.f32 0.0, %v1314
    %v1331 = vsub.f32 0.0, %v1315
    %v1332 = vsub.f32 0.0, %v1316
    %v1333 = vsub.f32 0.0, %v1317
    %v1334 = vsub.f32 0.0, %v1318
    %v1335 = vsub.f32 0.0, %v1319
    %v1336 = vsub.f32 0.0, %v1320
    %v1337 = vsub.f32 0.0, %v1321
    %v1338 = vsub.f32 0.0, %v1322
    %v1339 = vsub.f32 0.0, %v1323
    %v1340 = vsub.f32 0.0, %v1324
    %v1341 = vsub.f32 0.0, %v1325
    %v1342 = vsub.f32 0.0, %v1326
    %v1343 = vsub.f32 0.0, %v1327
    %v1344 = vsub.f32 0.0, %v1328
    %v1345 = vsub.f32 0.0, %v1329
    %v1346 = vmax.f32 %v1330, 0.0
    %v1347 = vmax.f32 %v1331, 0.0
    %v1348 = vmax.f32 %v1332, 0.0
    %v1349 = vmax.f32 %v1333, 0.0
    %v1350 = vmax.f32 %v1334, 0.0
    %v1351 = vmax.f32 %v1335, 0.0
    %v1352 = vmax.f32 %v1336, 0.0
    %v1353 = vmax.f32 %v1337, 0.0
    %v1354 = vmax.f32 %v1338, 0.0
    %v1355 = vmax.f32 %v1339, 0.0
    %v1356 = vmax.f32 %v1340, 0.0
    %v1357 = vmax.f32 %v1341, 0.0
    %v1358 = vmax.f32 %v1342, 0.0
    %v1359 = vmax.f32 %v1343, 0.0
    %v1360 = vmax.f32 %v1344, 0.0
    %v1361 = vmax.f32 %v1345, 0.0
    %v1362 = vand.u32 2147483647, %v1314
    %v1363 = vand.u32 2147483647, %v1315
    %v1364 = vand.u32 2147483647, %v1316
    %v1365 = vand.u32 2147483647, %v1317
    %v1366 = vand.u32 2147483647, %v1318
    %v1367 = vand.u32 2147483647, %v1319
    %v1368 = vand.u32 2147483647, %v1320
    %v1369 = vand.u32 2147483647, %v1321
    %v1370 = vand.u32 2147483647, %v1322
    %v1371 = vand.u32 2147483647, %v1323
    %v1372 = vand.u32 2147483647, %v1324
    %v1373 = vand.u32 2147483647, %v1325
    %v1374 = vand.u32 2147483647, %v1326
    %v1375 = vand.u32 2147483647, %v1327
    %v1376 = vand.u32 2147483647, %v1328
    %v1377 = vand.u32 2147483647, %v1329
    %v1378 = vsub.f32 0.0, %v1362
    %v1379 = vsub.f32 0.0, %v1363
    %v1380 = vsub.f32 0.0, %v1364
    %v1381 = vsub.f32 0.0, %v1365
    %v1382 = vsub.f32 0.0, %v1366
    %v1383 = vsub.f32 0.0, %v1367
    %v1384 = vsub.f32 0.0, %v1368
    %v1385 = vsub.f32 0.0, %v1369
    %v1386 = vsub.f32 0.0, %v1370
    %v1387 = vsub.f32 0.0, %v1371
    %v1388 = vsub.f32 0.0, %v1372
    %v1389 = vsub.f32 0.0, %v1373
    %v1390 = vsub.f32 0.0, %v1374
    %v1391 = vsub.f32 0.0, %v1375
    %v1392 = vsub.f32 0.0, %v1376
    %v1393 = vsub.f32 0.0, %v1377
    %v1394 = vmul.f32 %v1378, 1.442695
    %v1395 = vpow.pop %v1394
    %v1396 = vmul.f32 %v1379, 1.442695
    %v1397 = vpow.pop %v1396
    %v1398 = vmul.f32 %v1380, 1.442695
    %v1399 = vpow.pop %v1398
    %v1400 = vmul.f32 %v1381, 1.442695
    %v1401 = vpow.pop %v1400
    %v1402 = vmul.f32 %v1382, 1.442695
    %v1403 = vpow.pop %v1402
    %v1404 = vmul.f32 %v1383, 1.442695
    %v1405 = vpow.pop %v1404
    %v1406 = vmul.f32 %v1384, 1.442695
    %v1407 = vpow.pop %v1406
    %v1408 = vmul.f32 %v1385, 1.442695
    %v1409 = vpow.pop %v1408
    %v1410 = vmul.f32 %v1386, 1.442695
    %v1411 = vpow.pop %v1410
    %v1412 = vmul.f32 %v1387, 1.442695
    %v1413 = vpow.pop %v1412
    %v1414 = vmul.f32 %v1388, 1.442695
    %v1415 = vpow.pop %v1414
    %v1416 = vmul.f32 %v1389, 1.442695
    %v1417 = vpow.pop %v1416
    %v1418 = vmul.f32 %v1390, 1.442695
    %v1419 = vpow.pop %v1418
    %v1420 = vmul.f32 %v1391, 1.442695
    %v1421 = vpow.pop %v1420
    %v1422 = vmul.f32 %v1392, 1.442695
    %v1423 = vpow.pop %v1422
    %v1424 = vmul.f32 %v1393, 1.442695
    %v1425 = vpow.pop %v1424
    %v1426 = vadd.f32 %v1395, 1.0
    %v1427 = vlog2.pop %v1426
    %v1428 = vmul.f32 %v1427, 0.6931472
    %v1429 = vmul.f32 -0.5, %v1395
    %v1430 = vadd.f32 %v1429, 1.0
    %v1431 = vmul.f32 %v1430, %v1395
    %v1432 = vand.u32 2147483647, %v1395
    %vm1433 = vcmp.lt.f32.partialorder %v1432, 0.0004427343
    %v1434 = vsel %vm1433, %v1431, %v1428
    %v1435 = vadd.f32 %v1397, 1.0
    %v1436 = vlog2.pop %v1435
    %v1437 = vmul.f32 %v1436, 0.6931472
    %v1438 = vmul.f32 -0.5, %v1397
    %v1439 = vadd.f32 %v1438, 1.0
    %v1440 = vmul.f32 %v1439, %v1397
    %v1441 = vand.u32 2147483647, %v1397
    %vm1442 = vcmp.lt.f32.partialorder %v1441, 0.0004427343
    %v1443 = vsel %vm1442, %v1440, %v1437
    %v1444 = vadd.f32 %v1399, 1.0
    %v1445 = vlog2.pop %v1444
    %v1446 = vmul.f32 %v1445, 0.6931472
    %v1447 = vmul.f32 -0.5, %v1399
    %v1448 = vadd.f32 %v1447, 1.0
    %v1449 = vmul.f32 %v1448, %v1399
    %v1450 = vand.u32 2147483647, %v1399
    %vm1451 = vcmp.lt.f32.partialorder %v1450, 0.0004427343
    %v1452 = vsel %vm1451, %v1449, %v1446
    %v1453 = vadd.f32 %v1401, 1.0
    %v1454 = vlog2.pop %v1453
    %v1455 = vmul.f32 %v1454, 0.6931472
    %v1456 = vmul.f32 -0.5, %v1401
    %v1457 = vadd.f32 %v1456, 1.0
    %v1458 = vmul.f32 %v1457, %v1401
    %v1459 = vand.u32 2147483647, %v1401
    %vm1460 = vcmp.lt.f32.partialorder %v1459, 0.0004427343
    %v1461 = vsel %vm1460, %v1458, %v1455
    %v1462 = vadd.f32 %v1403, 1.0
    %v1463 = vlog2.pop %v1462
    %v1464 = vmul.f32 %v1463, 0.6931472
    %v1465 = vmul.f32 -0.5, %v1403
    %v1466 = vadd.f32 %v1465, 1.0
    %v1467 = vmul.f32 %v1466, %v1403
    %v1468 = vand.u32 2147483647, %v1403
    %vm1469 = vcmp.lt.f32.partialorder %v1468, 0.0004427343
    %v1470 = vsel %vm1469, %v1467, %v1464
    %v1471 = vadd.f32 %v1405, 1.0
    %v1472 = vlog2.pop %v1471
    %v1473 = vmul.f32 %v1472, 0.6931472
    %v1474 = vmul.f32 -0.5, %v1405
    %v1475 = vadd.f32 %v1474, 1.0
    %v1476 = vmul.f32 %v1475, %v1405
    %v1477 = vand.u32 2147483647, %v1405
    %vm1478 = vcmp.lt.f32.partialorder %v1477, 0.0004427343
    %v1479 = vsel %vm1478, %v1476, %v1473
    %v1480 = vadd.f32 %v1407, 1.0
    %v1481 = vlog2.pop %v1480
    %v1482 = vmul.f32 %v1481, 0.6931472
    %v1483 = vmul.f32 -0.5, %v1407
    %v1484 = vadd.f32 %v1483, 1.0
    %v1485 = vmul.f32 %v1484, %v1407
    %v1486 = vand.u32 2147483647, %v1407
    %vm1487 = vcmp.lt.f32.partialorder %v1486, 0.0004427343
    %v1488 = vsel %vm1487, %v1485, %v1482
    %v1489 = vadd.f32 %v1409, 1.0
    %v1490 = vlog2.pop %v1489
    %v1491 = vmul.f32 %v1490, 0.6931472
    %v1492 = vmul.f32 -0.5, %v1409
    %v1493 = vadd.f32 %v1492, 1.0
    %v1494 = vmul.f32 %v1493, %v1409
    %v1495 = vand.u32 2147483647, %v1409
    %vm1496 = vcmp.lt.f32.partialorder %v1495, 0.0004427343
    %v1497 = vsel %vm1496, %v1494, %v1491
    %v1498 = vadd.f32 %v1411, 1.0
    %v1499 = vlog2.pop %v1498
    %v1500 = vmul.f32 %v1499, 0.6931472
    %v1501 = vmul.f32 -0.5, %v1411
    %v1502 = vadd.f32 %v1501, 1.0
    %v1503 = vmul.f32 %v1502, %v1411
    %v1504 = vand.u32 2147483647, %v1411
    %vm1505 = vcmp.lt.f32.partialorder %v1504, 0.0004427343
    %v1506 = vsel %vm1505, %v1503, %v1500
    %v1507 = vadd.f32 %v1413, 1.0
    %v1508 = vlog2.pop %v1507
    %v1509 = vmul.f32 %v1508, 0.6931472
    %v1510 = vmul.f32 -0.5, %v1413
    %v1511 = vadd.f32 %v1510, 1.0
    %v1512 = vmul.f32 %v1511, %v1413
    %v1513 = vand.u32 2147483647, %v1413
    %vm1514 = vcmp.lt.f32.partialorder %v1513, 0.0004427343
    %v1515 = vsel %vm1514, %v1512, %v1509
    %v1516 = vadd.f32 %v1415, 1.0
    %v1517 = vlog2.pop %v1516
    %v1518 = vmul.f32 %v1517, 0.6931472
    %v1519 = vmul.f32 -0.5, %v1415
    %v1520 = vadd.f32 %v1519, 1.0
    %v1521 = vmul.f32 %v1520, %v1415
    %v1522 = vand.u32 2147483647, %v1415
    %vm1523 = vcmp.lt.f32.partialorder %v1522, 0.0004427343
    %v1524 = vsel %vm1523, %v1521, %v1518
    %v1525 = vadd.f32 %v1417, 1.0
    %v1526 = vlog2.pop %v1525
    %v1527 = vmul.f32 %v1526, 0.6931472
    %v1528 = vmul.f32 -0.5, %v1417
    %v1529 = vadd.f32 %v1528, 1.0
    %v1530 = vmul.f32 %v1529, %v1417
    %v1531 = vand.u32 2147483647, %v1417
    %vm1532 = vcmp.lt.f32.partialorder %v1531, 0.0004427343
    %v1533 = vsel %vm1532, %v1530, %v1527
    %v1534 = vadd.f32 %v1419, 1.0
    %v1535 = vlog2.pop %v1534
    %v1536 = vmul.f32 %v1535, 0.6931472
    %v1537 = vmul.f32 -0.5, %v1419
    %v1538 = vadd.f32 %v1537, 1.0
    %v1539 = vmul.f32 %v1538, %v1419
    %v1540 = vand.u32 2147483647, %v1419
    %vm1541 = vcmp.lt.f32.partialorder %v1540, 0.0004427343
    %v1542 = vsel %vm1541, %v1539, %v1536
    %v1543 = vadd.f32 %v1421, 1.0
    %v1544 = vlog2.pop %v1543
    %v1545 = vmul.f32 %v1544, 0.6931472
    %v1546 = vmul.f32 -0.5, %v1421
    %v1547 = vadd.f32 %v1546, 1.0
    %v1548 = vmul.f32 %v1547, %v1421
    %v1549 = vand.u32 2147483647, %v1421
    %vm1550 = vcmp.lt.f32.partialorder %v1549, 0.0004427343
    %v1551 = vsel %vm1550, %v1548, %v1545
    %v1552 = vadd.f32 %v1423, 1.0
    %v1553 = vlog2.pop %v1552
    %v1554 = vmul.f32 %v1553, 0.6931472
    %v1555 = vmul.f32 -0.5, %v1423
    %v1556 = vadd.f32 %v1555, 1.0
    %v1557 = vmul.f32 %v1556, %v1423
    %v1558 = vand.u32 2147483647, %v1423
    %vm1559 = vcmp.lt.f32.partialorder %v1558, 0.0004427343
    %v1560 = vsel %vm1559, %v1557, %v1554
    %v1561 = vadd.f32 %v1425, 1.0
    %v1562 = vlog2.pop %v1561
    %v1563 = vmul.f32 %v1562, 0.6931472
    %v1564 = vmul.f32 -0.5, %v1425
    %v1565 = vadd.f32 %v1564, 1.0
    %v1566 = vmul.f32 %v1565, %v1425
    %v1567 = vand.u32 2147483647, %v1425
    %vm1568 = vcmp.lt.f32.partialorder %v1567, 0.0004427343
    %v1569 = vsel %vm1568, %v1566, %v1563
    %v1570 = vadd.f32 %v1346, %v1434
    %v1571 = vadd.f32 %v1347, %v1443
    %v1572 = vadd.f32 %v1348, %v1452
    %v1573 = vadd.f32 %v1349, %v1461
    %v1574 = vadd.f32 %v1350, %v1470
    %v1575 = vadd.f32 %v1351, %v1479
    %v1576 = vadd.f32 %v1352, %v1488
    %v1577 = vadd.f32 %v1353, %v1497
    %v1578 = vadd.f32 %v1354, %v1506
    %v1579 = vadd.f32 %v1355, %v1515
    %v1580 = vadd.f32 %v1356, %v1524
    %v1581 = vadd.f32 %v1357, %v1533
    %v1582 = vadd.f32 %v1358, %v1542
    %v1583 = vadd.f32 %v1359, %v1551
    %v1584 = vadd.f32 %v1360, %v1560
    %v1585 = vadd.f32 %v1361, %v1569
    %v1586 = vlaneseq
    %v1587 = vshrl.u32 %v1586, 7
    %v1588 = vadd.s32 %v1587, 8
    %v1589 = vadd.s32 %v1587, 16
    %v1590 = vadd.s32 %v1587, 24
    %v1591 = vadd.s32 %v1587, 32
    %v1592 = vadd.s32 %v1587, 40
    %v1593 = vadd.s32 %v1587, 48
    %v1594 = vadd.s32 %v1587, 56
    %v1595 = vadd.s32 %v1587, 64
    %v1596 = vadd.s32 %v1587, 72
    %v1597 = vadd.s32 %v1587, 80
    %v1598 = vadd.s32 %v1587, 88
    %v1599 = vadd.s32 %v1587, 96
    %v1600 = vadd.s32 %v1587, 104
    %v1601 = vadd.s32 %v1587, 112
    %v1602 = vadd.s32 %v1587, 120
    %v1603 = vstv %s21
    %v1604 = vadd.s32 %v1587, %v1603
    %v1605 = vadd.s32 %v1588, %v1603
    %v1606 = vadd.s32 %v1589, %v1603
    %v1607 = vadd.s32 %v1590, %v1603
    %v1608 = vadd.s32 %v1591, %v1603
    %v1609 = vadd.s32 %v1592, %v1603
    %v1610 = vadd.s32 %v1593, %v1603
    %v1611 = vadd.s32 %v1594, %v1603
    %v1612 = vadd.s32 %v1595, %v1603
    %v1613 = vadd.s32 %v1596, %v1603
    %v1614 = vadd.s32 %v1597, %v1603
    %v1615 = vadd.s32 %v1598, %v1603
    %v1616 = vadd.s32 %v1599, %v1603
    %v1617 = vadd.s32 %v1600, %v1603
    %v1618 = vadd.s32 %v1601, %v1603
    %v1619 = vadd.s32 %v1602, %v1603
    %vm1620 = vcmp.lt.s32.totalorder %v1604, 8
    %vm1621 = vcmp.lt.s32.totalorder %v1605, 8
    %vm1622 = vcmp.lt.s32.totalorder %v1606, 8
    %vm1623 = vcmp.lt.s32.totalorder %v1607, 8
    %vm1624 = vcmp.lt.s32.totalorder %v1608, 8
    %vm1625 = vcmp.lt.s32.totalorder %v1609, 8
    %vm1626 = vcmp.lt.s32.totalorder %v1610, 8
    %vm1627 = vcmp.lt.s32.totalorder %v1611, 8
    %vm1628 = vcmp.lt.s32.totalorder %v1612, 8
    %vm1629 = vcmp.lt.s32.totalorder %v1613, 8
    %vm1630 = vcmp.lt.s32.totalorder %v1614, 8
    %vm1631 = vcmp.lt.s32.totalorder %v1615, 8
    %vm1632 = vcmp.lt.s32.totalorder %v1616, 8
    %vm1633 = vcmp.lt.s32.totalorder %v1617, 8
    %vm1634 = vcmp.lt.s32.totalorder %v1618, 8
    %vm1635 = vcmp.lt.s32.totalorder %v1619, 8
    %v1636 = vsel %vm1620, 1, 0
    %v1637 = vsel %vm1621, 1, 0
    %v1638 = vsel %vm1622, 1, 0
    %v1639 = vsel %vm1623, 1, 0
    %v1640 = vsel %vm1624, 1, 0
    %v1641 = vsel %vm1625, 1, 0
    %v1642 = vsel %vm1626, 1, 0
    %v1643 = vsel %vm1627, 1, 0
    %v1644 = vsel %vm1628, 1, 0
    %v1645 = vsel %vm1629, 1, 0
    %v1646 = vsel %vm1630, 1, 0
    %v1647 = vsel %vm1631, 1, 0
    %v1648 = vsel %vm1632, 1, 0
    %v1649 = vsel %vm1633, 1, 0
    %v1650 = vsel %vm1634, 1, 0
    %v1651 = vsel %vm1635, 1, 0
    %v1652 = vcvt.s32.f32 %v1636
    %v1653 = vcvt.s32.f32 %v1637
    %v1654 = vcvt.s32.f32 %v1638
    %v1655 = vcvt.s32.f32 %v1639
    %v1656 = vcvt.s32.f32 %v1640
    %v1657 = vcvt.s32.f32 %v1641
    %v1658 = vcvt.s32.f32 %v1642
    %v1659 = vcvt.s32.f32 %v1643
    %v1660 = vcvt.s32.f32 %v1644
    %v1661 = vcvt.s32.f32 %v1645
    %v1662 = vcvt.s32.f32 %v1646
    %v1663 = vcvt.s32.f32 %v1647
    %v1664 = vcvt.s32.f32 %v1648
    %v1665 = vcvt.s32.f32 %v1649
    %v1666 = vcvt.s32.f32 %v1650
    %v1667 = vcvt.s32.f32 %v1651
    %v1668 = vld [vmem:[#allocation4] sm:$0x1]
    %v1669 = vmul.f32 %v1570, %v1652
    %v1670 = vmul.f32 %v1571, %v1653
    %v1671 = vmul.f32 %v1572, %v1654
    %v1672 = vmul.f32 %v1573, %v1655
    %v1673 = vmul.f32 %v1574, %v1656
    %v1674 = vmul.f32 %v1575, %v1657
    %v1675 = vmul.f32 %v1576, %v1658
    %v1676 = vmul.f32 %v1577, %v1659
    %v1677 = vmul.f32 %v1578, %v1660
    %v1678 = vmul.f32 %v1579, %v1661
    %v1679 = vmul.f32 %v1580, %v1662
    %v1680 = vmul.f32 %v1581, %v1663
    %v1681 = vmul.f32 %v1582, %v1664
    %v1682 = vmul.f32 %v1583, %v1665
    %v1683 = vmul.f32 %v1584, %v1666
    %v1684 = vmul.f32 %v1585, %v1667
    %vm1685 = vcmask 7168
    %v1686 = vsel %vm1685, %v1669, 0.0
    %v1687 = vsel %vm1685, %v1670, 0.0
    %v1688 = vadd.f32 %v1686, %v1687
    %v1689 = vsel %vm1685, %v1671, 0.0
    %v1690 = vadd.f32 %v1688, %v1689
    %v1691 = vsel %vm1685, %v1672, 0.0
    %v1692 = vadd.f32 %v1690, %v1691
    %v1693 = vsel %vm1685, %v1673, 0.0
    %v1694 = vadd.f32 %v1692, %v1693
    %v1695 = vsel %vm1685, %v1674, 0.0
    %v1696 = vadd.f32 %v1694, %v1695
    %v1697 = vsel %vm1685, %v1675, 0.0
    %v1698 = vadd.f32 %v1696, %v1697
    %v1699 = vsel %vm1685, %v1676, 0.0
    %v1700 = vadd.f32 %v1698, %v1699
    %v1701 = vsel %vm1685, %v1677, 0.0
    %v1702 = vadd.f32 %v1700, %v1701
    %v1703 = vsel %vm1685, %v1678, 0.0
    %v1704 = vadd.f32 %v1702, %v1703
    %v1705 = vsel %vm1685, %v1679, 0.0
    %v1706 = vadd.f32 %v1704, %v1705
    %v1707 = vsel %vm1685, %v1680, 0.0
    %v1708 = vadd.f32 %v1706, %v1707
    %v1709 = vsel %vm1685, %v1681, 0.0
    %v1710 = vadd.f32 %v1708, %v1709
    %v1711 = vsel %vm1685, %v1682, 0.0
    %v1712 = vadd.f32 %v1710, %v1711
    %v1713 = vsel %vm1685, %v1683, 0.0
    %v1714 = vadd.f32 %v1712, %v1713
    %v1715 = vsel %vm1685, %v1684, 0.0
    %v1716 = vadd.f32 %v1714, %v1715
    %1717 = vadd.xlane.f32.xlu0 %v1716
    %v1718 = vpop.xlane.xlu0 %1717
    %v1719 = vrot.slane %v1718, 4
    %v1720 = vadd.f32 %v1718, %v1719
    %v1721 = vrot.slane %v1720, 2
    %v1722 = vadd.f32 %v1720, %v1721
    %v1723 = vrot.slane %v1722, 1
    %v1724 = vadd.f32 %v1722, %v1723
    %s1725 = vtos %v1724
    %v1726 = vstv %s1725
    %v1727 = vadd.f32 %v1668, %v1726
    %vm1728 = vcmask 0
    %1729 = vst.msk [vmem:[#allocation4] sm:$0x1] %vm1728, %v1727
    %vm1730 = vcmp.ge.f32.partialorder %v1314, 0.0
    %vm1731 = vcmp.ge.f32.partialorder %v1315, 0.0
    %vm1732 = vcmp.ge.f32.partialorder %v1316, 0.0
    %vm1733 = vcmp.ge.f32.partialorder %v1317, 0.0
    %vm1734 = vcmp.ge.f32.partialorder %v1318, 0.0
    %vm1735 = vcmp.ge.f32.partialorder %v1319, 0.0
    %vm1736 = vcmp.ge.f32.partialorder %v1320, 0.0
    %vm1737 = vcmp.ge.f32.partialorder %v1321, 0.0
    %vm1738 = vcmp.ge.f32.partialorder %v1322, 0.0
    %vm1739 = vcmp.ge.f32.partialorder %v1323, 0.0
    %vm1740 = vcmp.ge.f32.partialorder %v1324, 0.0
    %vm1741 = vcmp.ge.f32.partialorder %v1325, 0.0
    %vm1742 = vcmp.ge.f32.partialorder %v1326, 0.0
    %vm1743 = vcmp.ge.f32.partialorder %v1327, 0.0
    %vm1744 = vcmp.ge.f32.partialorder %v1328, 0.0
    %vm1745 = vcmp.ge.f32.partialorder %v1329, 0.0
    %vm1746 = vmand %vm1730, %vm1620
    %vm1747 = vmand %vm1731, %vm1621
    %vm1748 = vmand %vm1732, %vm1622
    %vm1749 = vmand %vm1733, %vm1623
    %vm1750 = vmand %vm1734, %vm1624
    %vm1751 = vmand %vm1735, %vm1625
    %vm1752 = vmand %vm1736, %vm1626
    %vm1753 = vmand %vm1737, %vm1627
    %vm1754 = vmand %vm1738, %vm1628
    %vm1755 = vmand %vm1739, %vm1629
    %vm1756 = vmand %vm1740, %vm1630
    %vm1757 = vmand %vm1741, %vm1631
    %vm1758 = vmand %vm1742, %vm1632
    %vm1759 = vmand %vm1743, %vm1633
    %vm1760 = vmand %vm1744, %vm1634
    %vm1761 = vmand %vm1745, %vm1635
    %v1762 = vld [vmem:[#allocation6] sm:$0x1]
    %v1763 = vsel %vm1746, 1, 0
    %v1764 = vsel %vm1747, 1, 0
    %v1765 = vsel %vm1748, 1, 0
    %v1766 = vsel %vm1749, 1, 0
    %v1767 = vsel %vm1750, 1, 0
    %v1768 = vsel %vm1751, 1, 0
    %v1769 = vsel %vm1752, 1, 0
    %v1770 = vsel %vm1753, 1, 0
    %v1771 = vsel %vm1754, 1, 0
    %v1772 = vsel %vm1755, 1, 0
    %v1773 = vsel %vm1756, 1, 0
    %v1774 = vsel %vm1757, 1, 0
    %v1775 = vsel %vm1758, 1, 0
    %v1776 = vsel %vm1759, 1, 0
    %v1777 = vsel %vm1760, 1, 0
    %v1778 = vsel %vm1761, 1, 0
    %v1779 = vadd.s32 %v1763, %v1767
    %v1780 = vadd.s32 %v1764, %v1768
    %v1781 = vadd.s32 %v1765, %v1769
    %v1782 = vadd.s32 %v1766, %v1770
    %v1783 = vadd.s32 %v1779, %v1771
    %v1784 = vadd.s32 %v1780, %v1772
    %v1785 = vadd.s32 %v1781, %v1773
    %v1786 = vadd.s32 %v1782, %v1774
    %v1787 = vadd.s32 %v1783, %v1775
    %v1788 = vadd.s32 %v1784, %v1776
    %v1789 = vadd.s32 %v1785, %v1777
    %v1790 = vadd.s32 %v1786, %v1778
    %v1791 = vadd.s32 %v1787, %v1788
    %v1792 = vadd.s32 %v1789, %v1790
    %v1793 = vadd.s32 %v1791, %v1792
    %v1794 = vrot.slane %v1793, 4
    %v1795 = vadd.s32 %v1793, %v1794
    %v1796 = vrot.slane %v1795, 2
    %v1797 = vadd.s32 %v1795, %v1796
    %v1798 = vrot.slane %v1797, 1
    %v1799 = vadd.s32 %v1797, %v1798
    %s1800 = vtos %v1799
    %v1801 = vstv %s1800
    %v1802 = vadd.s32 %v1762, %v1801
    %1803 = vst.msk [vmem:[#allocation6] sm:$0x1] %vm1728, %v1802
    // Predicated region
    $region22: #{tpu_custom_call.1} parent=1 // pred_check
      %p1804 = pneg %p22
    $region23: #{tpu_custom_call.1} parent=1 // pred_check_branch
      %1806 = sbr.rel (%p1804) target = $region25
    $region24: #{tpu_custom_call.1} parent=1 // pred_region
      %v1807 = vld [vmem:[#allocation4] sm:$0x1]
      %v1808 = vmul.f32 %v1807, 0.125
      %1809 = vst.msk [vmem:[#allocation4] sm:$0x1] %vm1728, %v1808
    $region25: #{tpu_custom_call.1} parent=1 // pred_fallthru
      _
    // Predicated region
    $region26: #{tpu_custom_call.1} parent=1 // pred_check
      _
    $region27: #{tpu_custom_call.1} parent=1 // pred_check_branch
      %1811 = sbr.rel (0) target = $region29
    $region28: #{tpu_custom_call.1} parent=1 // pred_region
      %s1813 = ssub.s32 16, 16
      %1814 = vsyncadd [#allocation5], %s1813
      %s1816 = sshll.u32 [#allocation4], 4
      %s1817 = int_to_ptr.vmem [resolvable:$true] %s1816
      %1819 = dma.vmem_to_hbm [thread:$0]  %s1817, 16, %s4, [#allocation5]
    $region29: #{tpu_custom_call.1} parent=1 // pred_fallthru
      _
    // Predicated region
    $region30: #{tpu_custom_call.1} parent=1 // pred_check
      _
    $region31: #{tpu_custom_call.1} parent=1 // pred_check_branch
      %1821 = sbr.rel (0) target = $region33
    $region32: #{tpu_custom_call.1} parent=1 // pred_region
      %s1823 = ssub.s32 16, 16
      %1824 = vsyncadd [#allocation7], %s1823
      %s1826 = sshll.u32 [#allocation6], 4
      %s1827 = int_to_ptr.vmem [resolvable:$true] %s1826
      %1829 = dma.vmem_to_hbm [thread:$0]  %s1827, 16, %s5, [#allocation7]
    $region33: #{tpu_custom_call.1} parent=1 // pred_fallthru
      _
    // Predicated region
    $region34: #{tpu_custom_call.1} parent=1 // pred_check
      _
    $region35: #{tpu_custom_call.1} parent=1 // pred_check_branch
      %1831 = sbr.rel (0) target = $region37
    $region36: #{tpu_custom_call.1} parent=1 // pred_region
      %1832 = dma.done [#allocation5], 16
    $region37: #{tpu_custom_call.1} parent=1 // pred_fallthru
      _
    // Predicated region
    $region38: #{tpu_custom_call.1} parent=1 // pred_check
      _
    $region39: #{tpu_custom_call.1} parent=1 // pred_check_branch
      %1834 = sbr.rel (0) target = $region41
    $region40: #{tpu_custom_call.1} parent=1 // pred_region
      %1835 = dma.done [#allocation7], 16
    $region41: #{tpu_custom_call.1} parent=1 // pred_fallthru
      _
    %1836 = vsyncpa [#allocation5], 1
    %1837 = vsyncpa [#allocation7], 1

</llo_original>
